<compile_context>
chip_gen: v7x
topology: tpu7x:2x2x1
jax: 0.10.0
libtpu: 0.0.40
codegen_flags: <defaults>
</compile_context>

<pallas_src>
import functools
import math

import jax
import jax.numpy as jnp
from jax.experimental import pallas as pl
from jax.experimental.pallas import tpu as pltpu


def _round_up(x, m):
    return ((x + m - 1) // m) * m


def _cdiv(a, b):
    return (a + b - 1) // b


def _resolve_th(hidden, th):
    th_eff = min(th, hidden)
    assert hidden % th_eff == 0, "hidden must be a multiple of the hidden tile"
    assert th_eff == hidden or th_eff % 128 == 0, \
        "hidden tile must be lane-aligned (multiple of 128) or cover all of hidden"
    return th_eff


# ---------------------------------------------------------------------------
# Kernels
# ---------------------------------------------------------------------------
def _swiglu_tile(x_ref, w13_ref, w2_ref):
    """f32 [tm, dim] contribution of one hidden tile: w2( silu(x@w1) * (x@w3) )."""
    th = w13_ref.shape[1] // 2
    # Single fused up-projection on the MXU: [tm, dim] @ [dim, 2*th].
    h13 = jnp.dot(x_ref[...], w13_ref[...], preferred_element_type=jnp.float32)
    h1 = h13[:, :th]                       # lane-aligned slices (th % 128 == 0)
    h3 = h13[:, th:]
    gated = (h1 * jax.nn.sigmoid(h1)) * h3         # SiLU gate in f32
    return jnp.dot(gated.astype(jnp.bfloat16), w2_ref[...],
                   preferred_element_type=jnp.float32)


def _ffn_kernel_f32_out(x_ref, w13_ref, w2_ref, o_ref):
    """f32 output: accumulate directly into the resident o_ref block."""
    h = pl.program_id(1)

    @pl.when(h == 0)
    def _init():
        o_ref[...] = jnp.zeros_like(o_ref)

    o_ref[...] += _swiglu_tile(x_ref, w13_ref, w2_ref)


def _ffn_kernel_scratch(x_ref, w13_ref, w2_ref, o_ref, acc_ref):
    """Generic output dtype: f32 scratch accumulator + final cast/store."""
    h = pl.program_id(1)

    @pl.when(h == 0)
    def _init():
        acc_ref[...] = jnp.zeros_like(acc_ref)

    acc_ref[...] += _swiglu_tile(x_ref, w13_ref, w2_ref)

    @pl.when(h == pl.num_programs(1) - 1)
    def _store():
        o_ref[...] = acc_ref[...].astype(o_ref.dtype)


# ---------------------------------------------------------------------------
# One-time parameter prep (do at load time, NOT per forward call)
# ---------------------------------------------------------------------------
def prepare_ffn_params(w1, w2, w3, th=512, dtype=jnp.bfloat16):
    """w1, w3: [hidden, dim] (nn.Linear layout); w2: [dim, hidden].

    Returns:
      w13 : [dim, 2*hidden] bf16 — per-hidden-tile interleaved [w1_h | w3_h]
      w2_t: [hidden, dim]   bf16
    `th` must match the hidden tile used by feedforward_pallas.
    """
    hidden, dim = w1.shape
    assert w3.shape == (hidden, dim) and w2.shape == (dim, hidden)
    th_eff = _resolve_th(hidden, th)
    n_h = hidden // th_eff
    w1_t = jnp.asarray(w1, dtype=dtype).T.reshape(dim, n_h, th_eff)
    w3_t = jnp.asarray(w3, dtype=dtype).T.reshape(dim, n_h, th_eff)
    w13 = jnp.concatenate([w1_t, w3_t], axis=2).reshape(dim, 2 * hidden)
    w2_t = jnp.asarray(w2, dtype=dtype).T                         # [hidden, dim]
    return w13, w2_t


def _tpu_generation_defaults():
    kind = ""
    try:
        kind = jax.devices()[0].device_kind.lower()
    except Exception:
        pass
    try:
        vmem_cap = int(pltpu.get_tpu_info().vmem_capacity_bytes)
    except Exception:
        vmem_cap = 64 << 20                 # conservative (v7x per-TC)
    if "v6" in kind:
        tm_default = 1024                   # 918 TF / 1.37 TB/s -> ~670-row break-even
    elif "v7" in kind:
        tm_default = 512                    # 996 TF / 3.2 TB/s  -> ~320-row break-even
    else:                                   # v5e / v5p / unknown
        tm_default = 512                    # 197 TF / 0.82 TB/s -> ~240-row break-even
    two_tc = "v7" in kind                   # 2 TensorCores/chip: keep grid[0] >= 2
    return tm_default, two_tc, vmem_cap


# ---------------------------------------------------------------------------
# Wrapper
# ---------------------------------------------------------------------------
@functools.partial(jax.jit, static_argnames=("tm", "th"))
def feedforward_pallas(x, w13, w2_t, *, tm=None, th=512):
    """x: [..., dim]; w13: [dim, 2*hidden] bf16 (from prepare_ffn_params with
    the SAME `th`); w2_t: [hidden, dim] bf16.  Returns [..., dim] in x.dtype."""
    orig_shape = x.shape
    dim = orig_shape[-1]
    hidden = w2_t.shape[0]
    assert w2_t.shape == (hidden, dim)
    assert w13.shape == (dim, 2 * hidden)

    th_eff = _resolve_th(hidden, th)
    M = math.prod(orig_shape[:-1])

    out_dtype = x.dtype
    out_b = jnp.dtype(out_dtype).itemsize
    f32_out = out_dtype == jnp.float32

    tm_default, two_tc, vmem_cap = _tpu_generation_defaults()

    # ---- row tiling (balanced; 16-row granule for bf16 sublane packing) ----
    GR = 16
    tm_target = tm if tm is not None else tm_default
    tm_target = max(GR, min(int(tm_target), _round_up(M, GR)))
    if two_tc and M >= 2 * GR:
        tm_target = min(tm_target, _round_up(_cdiv(M, 2), GR))
    n_row = _cdiv(M, tm_target)
    tm_eff = _round_up(_cdiv(M, n_row), GR)

    # ---- VMEM budget (per generation) & tile auto-shrink ----
    def vmem_est(tm_r):
        return (2 * tm_r * dim * 2                    # x tile (bf16), 2-deep
                + 2 * dim * (2 * th_eff) * 2          # fused w1|w3 tile, 2-deep
                + 2 * th_eff * dim * 2                # w2 tile, 2-deep
                + 2 * tm_r * dim * out_b              # out tile, 2-deep
                + (0 if f32_out else tm_r * dim * 4)  # acc scratch
                + 6 * tm_r * th_eff * 4)              # h13 / gate f32 live values

    budget = int(0.85 * vmem_cap)
    while vmem_est(tm_eff) > budget and tm_eff > GR:
        tm_eff = max(GR, _round_up(tm_eff // 2, GR))
    n_row = _cdiv(M, tm_eff)
    M_pad = n_row * tm_eff
    vmem_limit = int(max(min(2 * vmem_est(tm_eff), budget), min(32 << 20, budget)))

    # ---- input prep: single bf16 cast + ragged-row padding ----
    x2d = x.reshape(M, dim)
    if x2d.dtype != jnp.bfloat16:
        x2d = x2d.astype(jnp.bfloat16)
    if M_pad != M:
        x2d = jnp.pad(x2d, ((0, M_pad - M), (0, 0)))

    grid = (n_row, hidden // th_eff)

    cost = pl.CostEstimate(
        flops=6 * M_pad * dim * hidden,
        transcendentals=M_pad * hidden,
        bytes_accessed=(M_pad * dim * 2                     # x read (bf16)
                        + M_pad * dim * out_b               # out write
                        + n_row * 3 * dim * hidden * 2),    # weights per row tile
    )

    if f32_out:
        kernel = _ffn_kernel_f32_out
        scratch_shapes = []
    else:
        kernel = _ffn_kernel_scratch
        scratch_shapes = [pltpu.VMEM((tm_eff, dim), jnp.float32)]

    out2d = pl.pallas_call(
        kernel,
        out_shape=jax.ShapeDtypeStruct((M_pad, dim), out_dtype),
        grid_spec=pltpu.PrefetchScalarGridSpec(
            num_scalar_prefetch=0,
            grid=grid,
            in_specs=[
                pl.BlockSpec((tm_eff, dim), lambda i, h: (i, 0)),       # x rows
                pl.BlockSpec((dim, 2 * th_eff), lambda i, h: (0, h)),   # [w1|w3] tile
                pl.BlockSpec((th_eff, dim), lambda i, h: (h, 0)),       # w2 tile
            ],
            out_specs=pl.BlockSpec((tm_eff, dim), lambda i, h: (i, 0)),
            scratch_shapes=scratch_shapes,
        ),
        compiler_params=pltpu.CompilerParams(
            dimension_semantics=("parallel", "arbitrary"),
            vmem_limit_bytes=vmem_limit,
        ),
        cost_estimate=cost,
    )(x2d, w13, w2_t)

    if M_pad != M:
        out2d = out2d[:M]
    return out2d.reshape(orig_shape)


def _compute_hidden_dim(dim, hidden_dim, multiple_of, ffn_dim_multiplier):
    # Mirrors FeedForward.__init__ exactly.
    hidden_dim = int(2 * hidden_dim / 3)
    if ffn_dim_multiplier is not None:
        hidden_dim = int(ffn_dim_multiplier * hidden_dim)
    return multiple_of * ((hidden_dim + multiple_of - 1) // multiple_of)


if __name__ == "__main__":
    # Small but tile-friendly config exercising both grid axes
    # (2 row tiles x 2 hidden tiles).
    dim = 256
    hidden_dim_arg = 768
    multiple_of = 256
    hidden = _compute_hidden_dim(dim, hidden_dim_arg, multiple_of, None)   # -> 512

    batch, seq = 2, 256        # M = 512
    th = 256                   # 2 hidden tiles

    key = jax.random.PRNGKey(0)
    kx, k1, k2, k3 = jax.random.split(key, 4)
    x = jax.random.normal(kx, (batch, seq, dim), dtype=jnp.float32)
    # nn.Linear weight layout: [out_features, in_features]
    w1 = jax.random.normal(k1, (hidden, dim), dtype=jnp.float32) * 0.02
    w2 = jax.random.normal(k2, (dim, hidden), dtype=jnp.float32) * 0.02
    w3 = jax.random.normal(k3, (hidden, dim), dtype=jnp.float32) * 0.02

    # One-time parameter prep (transpose + bf16 cast + w1/w3 fuse), off hot path.
    w13, w2_t = prepare_ffn_params(w1, w2, w3, th=th)

    out = feedforward_pallas(x, w13, w2_t, tm=256, th=th)
    out = jax.block_until_ready(out)

    # Pure-f32 reference; bf16 MXU matmuls (f32 accumulate) -> loosened tolerance.
    h1 = x @ w1.T
    h3 = x @ w3.T
    ref = ((h1 * jax.nn.sigmoid(h1)) * h3) @ w2.T
    assert out.shape == (batch, seq, dim)
    err = float(jnp.max(jnp.abs(out - ref)))
    assert jnp.allclose(out, ref, atol=2e-2, rtol=2e-2), f"max abs err {err}"

    print("KERNEL_OK")
</pallas_src>

<mosaic_0001>
module attributes {stable_mosaic.version = 11 : i64} {
  func.func @_ffn_kernel_f32_out(%arg0: i32, %arg1: i32, %arg2: memref<256x256xbf16, #tpu.memory_space<vmem>>, %arg3: memref<256x512xbf16, #tpu.memory_space<vmem>>, %arg4: memref<256x256xbf16, #tpu.memory_space<vmem>>, %arg5: memref<256x256xf32, #tpu.memory_space<vmem>>) attributes {dimension_semantics = [#tpu.dimension_semantics<parallel>, #tpu.dimension_semantics<arbitrary>], iteration_bounds = array<i64: 2, 2>, scalar_prefetch = 0 : i64, scratch_operands = 0 : i64, tpu.core_type = #tpu.core_type<tc>, window_params = [{transform_indices = @transform_0, window_bounds = array<i64: 256, 256>}, {transform_indices = @transform_1, window_bounds = array<i64: 256, 512>}, {transform_indices = @transform_2, window_bounds = array<i64: 256, 256>}, {transform_indices = @transform_3, window_bounds = array<i64: 256, 256>}]} {
    %c0_i32 = arith.constant 0 : i32
    %0 = arith.cmpi eq, %arg1, %c0_i32 : i32
    %1 = arith.extui %0 : i1 to i32
    %c0_i32_0 = arith.constant 0 : i32
    %2 = arith.cmpi ne, %1, %c0_i32_0 : i32
    scf.if %2 {
      %cst_12 = arith.constant 0.000000e+00 : f32
      %21 = vector.broadcast %cst_12 : f32 to vector<256x256xf32>
      %c0_13 = arith.constant 0 : index
      %c0_14 = arith.constant 0 : index
      %22 = vector.load %arg5[%c0_13, %c0_14] : memref<256x256xf32, #tpu.memory_space<vmem>>, vector<256x256xf32>
      tpu.vector_store %arg5[%c0_13, %c0_14], %21 {strides = array<i32>} : memref<256x256xf32, #tpu.memory_space<vmem>>, vector<256x256xf32>,
    } else {
    }
    %c0 = arith.constant 0 : index
    %c0_1 = arith.constant 0 : index
    %3 = vector.load %arg5[%c0, %c0_1] : memref<256x256xf32, #tpu.memory_space<vmem>>, vector<256x256xf32>
    %c0_2 = arith.constant 0 : index
    %c0_3 = arith.constant 0 : index
    %4 = vector.load %arg2[%c0_2, %c0_3] : memref<256x256xbf16, #tpu.memory_space<vmem>>, vector<256x256xbf16>
    %c0_4 = arith.constant 0 : index
    %c0_5 = arith.constant 0 : index
    %5 = vector.load %arg3[%c0_4, %c0_5] : memref<256x512xbf16, #tpu.memory_space<vmem>>, vector<256x512xbf16>
    %cst = arith.constant dense<0.000000e+00> : vector<256x512xf32>
    %6 = tpu.matmul %4, %5, %cst {dimension_numbers = #tpu.dot_dimension_numbers<[1], [0], [0], [1], [0, 0, 1, 1], [], []>} : vector<256x256xbf16>, vector<256x512xbf16>, vector<256x512xf32> -> vector<256x512xf32>
    %7 = vector.extract_strided_slice %6 {offsets = [0, 0], sizes = [256, 256], strides = [1, 1]} : vector<256x512xf32> to vector<256x256xf32>
    %8 = vector.extract_strided_slice %6 {offsets = [0, 256], sizes = [256, 256], strides = [1, 1]} : vector<256x512xf32> to vector<256x256xf32>
    %9 = arith.negf %7 : vector<256x256xf32>
    %10 = math.exp %9 : vector<256x256xf32>
    %cst_6 = arith.constant 1.000000e+00 : f32
    %11 = vector.broadcast %cst_6 : f32 to vector<256x256xf32>
    %12 = arith.addf %11, %10 : vector<256x256xf32>
    %13 = arith.divf %11, %12 : vector<256x256xf32>
    %14 = arith.mulf %7, %13 : vector<256x256xf32>
    %15 = arith.mulf %14, %8 : vector<256x256xf32>
    %16 = arith.truncf %15 : vector<256x256xf32> to vector<256x256xbf16>
    %c0_7 = arith.constant 0 : index
    %c0_8 = arith.constant 0 : index
    %17 = vector.load %arg4[%c0_7, %c0_8] : memref<256x256xbf16, #tpu.memory_space<vmem>>, vector<256x256xbf16>
    %cst_9 = arith.constant dense<0.000000e+00> : vector<256x256xf32>
    %18 = tpu.matmul %16, %17, %cst_9 {dimension_numbers = #tpu.dot_dimension_numbers<[1], [0], [0], [1], [0, 0, 1, 1], [], []>} : vector<256x256xbf16>, vector<256x256xbf16>, vector<256x256xf32> -> vector<256x256xf32>
    %19 = arith.addf %3, %18 : vector<256x256xf32>
    %c0_10 = arith.constant 0 : index
    %c0_11 = arith.constant 0 : index
    %20 = vector.load %arg5[%c0_10, %c0_11] : memref<256x256xf32, #tpu.memory_space<vmem>>, vector<256x256xf32>
    tpu.vector_store %arg5[%c0_10, %c0_11], %19 {strides = array<i32>} : memref<256x256xf32, #tpu.memory_space<vmem>>, vector<256x256xf32>,
    return
  }
  func.func @transform_0(%arg0: i32, %arg1: i32) -> (i32, i32) {
    %c0_i32 = arith.constant 0 : i32
    %c0_i32_0 = arith.constant 0 : i32
    return %arg0, %c0_i32 : i32, i32
  }
  func.func @transform_1(%arg0: i32, %arg1: i32) -> (i32, i32) {
    %c0_i32 = arith.constant 0 : i32
    %c0_i32_0 = arith.constant 0 : i32
    return %c0_i32, %arg1 : i32, i32
  }
  func.func @transform_2(%arg0: i32, %arg1: i32) -> (i32, i32) {
    %c0_i32 = arith.constant 0 : i32
    %c0_i32_0 = arith.constant 0 : i32
    return %arg1, %c0_i32 : i32, i32
  }
  func.func @transform_3(%arg0: i32, %arg1: i32) -> (i32, i32) {
    %c0_i32 = arith.constant 0 : i32
    %c0_i32_0 = arith.constant 0 : i32
    return %arg0, %c0_i32 : i32, i32
  }
}

</mosaic_0001>

<llo_original>
// kernel: feedforward_pallas.1
$region0: #{feedforward_pallas.1}
  #allocation0 [shape = 'u32[]', space=smem, size = 0x4, offset = 0x4, fixed_abs, tag = 'smem constant byte address 0x4 - core index']
  #allocation1 [shape = 'u32[144,128]{1,0:T(1,128)}', space=vmem, size = 0x12000, scoped, tag = 'internal scratch']
  %s0 = inlined_call_operand.vmem [shape: bf16[512,256], index: 0, kind: input, shape index: {}]
  %s1 = inlined_call_operand.vmem [shape: bf16[256,1024], index: 1, kind: input, shape index: {}]
  %s2 = inlined_call_operand.vmem [shape: bf16[512,256], index: 2, kind: input, shape index: {}]
  %s3 = inlined_call_operand.hbm [shape: f32[512,256], index: 3, kind: output, shape index: {}]
  %s4 = sld [smem:[#allocation0]]
  $region72: #{feedforward_pallas.1} parent=0
    _
  %s6 = ssub.s32 1, %s4
  %s7 = scalar_select 0, %s6, %s4
  $region1: #{feedforward_pallas.1} parent=0
    #allocation2 [shape = 'u8[524288]{0}', space=vmem, size = 0x80000, scoped, tag = 'input window, operand 1']
    #allocation3 [shape = 'u8[524288]{0}', space=vmem, size = 0x80000, scoped, tag = 'output window, operand 0']
    #allocation4 [shape = 's32[2]{0}', space=sflag, size = 0x8, scoped, tag = 'scoped memory for feedforward_pallas.1']
    %8 = vsyncpa [#allocation4], 0
    %s9 = scalar_lea.sflag [#allocation4], 1
    %10 = vsyncpa %s9, 0
    loop: start=0, step=1, limit=6
    $region2: #{feedforward_pallas.1} parent=1 // loop_pre_header
      _
    $region3: #{feedforward_pallas.1} parent=1 // loop_header
      %s12 = sphi 0, %s16
      %p13 = scmp.ge.s32.totalorder %s12, 6
      %s19 = sphi 0, %s31
      %s20 = sphi 0, %s27
      %s21 = sphi 0, %s19
      %s22 = sphi 0, %s20
      %s23 = sphi 0, %s21
      %s24 = sphi 0, %s22
      %s34 = sphi 0, %s36
      %s37 = sphi 0, %s34
      %s38 = sphi 0, %s37
      %s54 = sphi 0, %s38
      %s60 = sphi 0, %s62
      %s63 = sphi 0, %s60
      %s64 = sphi 0, %s63
      %s80 = sphi 0, %s64
      %s86 = sphi 0, %s88
      %s89 = sphi 0, %s86
      %s90 = sphi 0, %s89
      %s106 = sphi 0, %s90
      %s112 = sphi 0, %s114
      %s115 = sphi 0, %s112
      %s116 = sphi 0, %s115
      %s132 = sphi 0, %s116
    $region4: #{feedforward_pallas.1} parent=1 // loop_header_branch
      %15 = sbr.rel (%p13) target = $region8
    $region5: #{feedforward_pallas.1} parent=1 // loop_body
      %s17 = ssub.s32 %s12, 1
      %s18 = ssub.s32 %s12, 2
      %s25 = sadd.s32 1, %s20
      %p26 = scmp.ge.s32.totalorder %s25, 2
      %s27 = scalar_select %p26, 0, %s25
      %s28 = sadd.s32 1, %s19
      %s29 = scalar_select %p26, %s28, %s19
      %p30 = scmp.ge.s32.totalorder %s29, 2
      %s31 = scalar_select %p30, 0, %s29
      %s32 = ssub.s32 %s19, %s31
      %p33 = scmp.eq.s32.totalorder %s32, 0
      %s35 = sadd.s32 %s34, 1
      %s36 = scalar_select %p33, %s34, %s35
      %p39 = pneg %p33
      %p40 = scmp.eq.s32.totalorder %s12, 3
      %p41 = por %p39, %p40
      %p42 = scmp.ne.s32.totalorder %s34, %s37
      %p43 = scmp.eq.s32.totalorder %s12, 0
      %p44 = por %p42, %p43
      %p45 = scmp.ne.s32.totalorder %s34, %s37
      %p46 = scmp.eq.s32.totalorder %s17, 3
      %p47 = por %p45, %p46
      %p48 = scmp.ne.s32.totalorder %s37, %s38
      %p49 = scmp.eq.s32.totalorder %s17, 0
      %p50 = por %p48, %p49
      %p51 = scmp.ne.s32.totalorder %s37, %s38
      %p52 = scmp.eq.s32.totalorder %s18, 3
      %p53 = por %p51, %p52
      %p55 = scmp.ne.s32.totalorder %s38, %s54
      %p56 = scmp.eq.s32.totalorder %s18, 0
      %p57 = por %p55, %p56
      %s58 = ssub.s32 %s20, %s27
      %p59 = scmp.eq.s32.totalorder %s58, 0
      %s61 = sadd.s32 %s60, 1
      %s62 = scalar_select %p59, %s60, %s61
      %p65 = pneg %p59
      %p66 = scmp.eq.s32.totalorder %s12, 3
      %p67 = por %p65, %p66
      %p68 = scmp.ne.s32.totalorder %s60, %s63
      %p69 = scmp.eq.s32.totalorder %s12, 0
      %p70 = por %p68, %p69
      %p71 = scmp.ne.s32.totalorder %s60, %s63
      %p72 = scmp.eq.s32.totalorder %s17, 3
      %p73 = por %p71, %p72
      %p74 = scmp.ne.s32.totalorder %s63, %s64
      %p75 = scmp.eq.s32.totalorder %s17, 0
      %p76 = por %p74, %p75
      %p77 = scmp.ne.s32.totalorder %s63, %s64
      %p78 = scmp.eq.s32.totalorder %s18, 3
      %p79 = por %p77, %p78
      %p81 = scmp.ne.s32.totalorder %s64, %s80
      %p82 = scmp.eq.s32.totalorder %s18, 0
      %p83 = por %p81, %p82
      %s84 = ssub.s32 %s20, %s27
      %p85 = scmp.eq.s32.totalorder %s84, 0
      %s87 = sadd.s32 %s86, 1
      %s88 = scalar_select %p85, %s86, %s87
      %p91 = pneg %p85
      %p92 = scmp.eq.s32.totalorder %s12, 3
      %p93 = por %p91, %p92
      %p94 = scmp.ne.s32.totalorder %s86, %s89
      %p95 = scmp.eq.s32.totalorder %s12, 0
      %p96 = por %p94, %p95
      %p97 = scmp.ne.s32.totalorder %s86, %s89
      %p98 = scmp.eq.s32.totalorder %s17, 3
      %p99 = por %p97, %p98
      %p100 = scmp.ne.s32.totalorder %s89, %s90
      %p101 = scmp.eq.s32.totalorder %s17, 0
      %p102 = por %p100, %p101
      %p103 = scmp.ne.s32.totalorder %s89, %s90
      %p104 = scmp.eq.s32.totalorder %s18, 3
      %p105 = por %p103, %p104
      %p107 = scmp.ne.s32.totalorder %s90, %s106
      %p108 = scmp.eq.s32.totalorder %s18, 0
      %p109 = por %p107, %p108
      %s110 = ssub.s32 %s19, %s31
      %p111 = scmp.eq.s32.totalorder %s110, 0
      %s113 = sadd.s32 %s112, 1
      %s114 = scalar_select %p111, %s112, %s113
      %p117 = pneg %p111
      %p118 = scmp.eq.s32.totalorder %s12, 3
      %p119 = por %p117, %p118
      %p120 = scmp.ne.s32.totalorder %s112, %s115
      %p121 = scmp.eq.s32.totalorder %s12, 0
      %p122 = por %p120, %p121
      %p123 = scmp.ne.s32.totalorder %s112, %s115
      %p124 = scmp.eq.s32.totalorder %s17, 3
      %p125 = por %p123, %p124
      %p126 = scmp.ne.s32.totalorder %s115, %s116
      %p127 = scmp.eq.s32.totalorder %s17, 0
      %p128 = por %p126, %p127
      %p129 = scmp.ne.s32.totalorder %s115, %s116
      %p130 = scmp.eq.s32.totalorder %s18, 3
      %p131 = por %p129, %p130
      %p133 = scmp.ne.s32.totalorder %s116, %s132
      %p134 = scmp.eq.s32.totalorder %s18, 0
      %p135 = por %p133, %p134
      %p136 = scmp.le.s32.totalorder 1, %s12
      %p137 = scmp.lt.s32.totalorder %s12, 5
      %p138 = pnand %p136, %p137
      %p139 = pneg %p138
      // Predicated region
      $region9: #{feedforward_pallas.1} parent=5 // pred_check
        _
      $region10: #{feedforward_pallas.1} parent=5 // pred_check_branch
        %141 = sbr.rel (%p138) target = $region12
      $region11: #{feedforward_pallas.1} parent=5 // pred_region
        %s142 = ssub.s32 %s12, 1
      $region12: #{feedforward_pallas.1} parent=5 // pred_fallthru
        _
      %p143 = scmp.lt.s32.totalorder %s12, 4
      // Predicated region
      $region13: #{feedforward_pallas.1} parent=5 // pred_check
        %p144 = pneg %p143
      $region14: #{feedforward_pallas.1} parent=5 // pred_check_branch
        %146 = sbr.rel (%p144) target = $region16
      $region15: #{feedforward_pallas.1} parent=5 // pred_region
        // Predicated region
        $region17: #{feedforward_pallas.1} parent=15 // pred_check
          %p147 = pneg %p44
        $region18: #{feedforward_pallas.1} parent=15 // pred_check_branch
          %149 = sbr.rel (%p147) target = $region20
        $region19: #{feedforward_pallas.1} parent=15 // pred_region
          %s150 = smul.u32 32, %s19
          %p151 = scmp.lt.s32.totalorder %s150, 63
          %s152 = scalar_select %p151, %s150, 63
          %s153 = smul.addr %s152, 2
          %s154 = smul.addr %s153, 4
          %s155 = scalar_lea.vmem %s0, %s154
          %s156 = smul.u32 32, %s19
        $region20: #{feedforward_pallas.1} parent=15 // pred_fallthru
          _
        // Predicated region
        $region21: #{feedforward_pallas.1} parent=15 // pred_check
          %p157 = pneg %p70
        $region22: #{feedforward_pallas.1} parent=15 // pred_check_branch
          %159 = sbr.rel (%p157) target = $region24
        $region23: #{feedforward_pallas.1} parent=15 // pred_region
          %s160 = sand.u32 %s60, 1
          %s161 = sand.u32 %s60, 1
          %s162 = smul.addr %s161, 512
          %s163 = scalar_lea.vmem [#allocation2], %s162
          %s164 = smul.u32 4, %s20
          %s165 = smul.addr %s164, 4
          %s166 = scalar_lea.vmem %s1, %s165
          // Predicated region
          $region25: #{feedforward_pallas.1} parent=23 // pred_check
            _
          $region26: #{feedforward_pallas.1} parent=23 // pred_check_branch
            %168 = sbr.rel (0) target = $region28
          $region27: #{feedforward_pallas.1} parent=23 // pred_region
            // Predicated region
            $region29: #{feedforward_pallas.1} parent=27 // pred_check
              _
            $region30: #{feedforward_pallas.1} parent=27 // pred_check_branch
              %170 = sbr.rel (0) target = $region32
            $region31: #{feedforward_pallas.1} parent=27 // pred_region
              loop: start=0, step=1, limit=1
              $region33: #{feedforward_pallas.1} parent=31 // loop_pre_header
                _
              $region34: #{feedforward_pallas.1} parent=31 // loop_header
                %s172 = sphi 0, %s176
                %p173 = scmp.ge.s32.totalorder %s172, 1
                %s177 = sphi %s166, %s166
                %s178 = sphi %s163, %s163
              $region35: #{feedforward_pallas.1} parent=31 // loop_header_branch
                %175 = sbr.rel (%p173) target = $region39
              $region36: #{feedforward_pallas.1} parent=31 // loop_body
                %v179 = vld [vmem:[%s177] sm:$0xff]
                %180 = vst [vmem:[%s178] sm:$0xff] %v179
                %v181 = vld [vmem:[%s177 + $0x8] sm:$0xff]
                %182 = vst [vmem:[%s178 + $0x8] sm:$0xff] %v181
                %v183 = vld [vmem:[%s177 + $0x20] sm:$0xff]
                %184 = vst [vmem:[%s178 + $0x10] sm:$0xff] %v183
                %v185 = vld [vmem:[%s177 + $0x28] sm:$0xff]
                %186 = vst [vmem:[%s178 + $0x18] sm:$0xff] %v185
                %v187 = vld [vmem:[%s177 + $0x40] sm:$0xff]
                %188 = vst [vmem:[%s178 + $0x20] sm:$0xff] %v187
                %v189 = vld [vmem:[%s177 + $0x48] sm:$0xff]
                %190 = vst [vmem:[%s178 + $0x28] sm:$0xff] %v189
                %v191 = vld [vmem:[%s177 + $0x60] sm:$0xff]
                %192 = vst [vmem:[%s178 + $0x30] sm:$0xff] %v191
                %v193 = vld [vmem:[%s177 + $0x68] sm:$0xff]
                %194 = vst [vmem:[%s178 + $0x38] sm:$0xff] %v193
                %v195 = vld [vmem:[%s177 + $0x80] sm:$0xff]
                %196 = vst [vmem:[%s178 + $0x40] sm:$0xff] %v195
                %v197 = vld [vmem:[%s177 + $0x88] sm:$0xff]
                %198 = vst [vmem:[%s178 + $0x48] sm:$0xff] %v197
                %v199 = vld [vmem:[%s177 + $0xa0] sm:$0xff]
                %200 = vst [vmem:[%s178 + $0x50] sm:$0xff] %v199
                %v201 = vld [vmem:[%s177 + $0xa8] sm:$0xff]
                %202 = vst [vmem:[%s178 + $0x58] sm:$0xff] %v201
                %v203 = vld [vmem:[%s177 + $0xc0] sm:$0xff]
                %204 = vst [vmem:[%s178 + $0x60] sm:$0xff] %v203
                %v205 = vld [vmem:[%s177 + $0xc8] sm:$0xff]
                %206 = vst [vmem:[%s178 + $0x68] sm:$0xff] %v205
                %v207 = vld [vmem:[%s177 + $0xe0] sm:$0xff]
                %208 = vst [vmem:[%s178 + $0x70] sm:$0xff] %v207
                %v209 = vld [vmem:[%s177 + $0xe8] sm:$0xff]
                %210 = vst [vmem:[%s178 + $0x78] sm:$0xff] %v209
                %v211 = vld [vmem:[%s177 + $0x100] sm:$0xff]
                %212 = vst [vmem:[%s178 + $0x80] sm:$0xff] %v211
                %v213 = vld [vmem:[%s177 + $0x108] sm:$0xff]
                %214 = vst [vmem:[%s178 + $0x88] sm:$0xff] %v213
                %v215 = vld [vmem:[%s177 + $0x120] sm:$0xff]
                %216 = vst [vmem:[%s178 + $0x90] sm:$0xff] %v215
                %v217 = vld [vmem:[%s177 + $0x128] sm:$0xff]
                %218 = vst [vmem:[%s178 + $0x98] sm:$0xff] %v217
                %v219 = vld [vmem:[%s177 + $0x140] sm:$0xff]
                %220 = vst [vmem:[%s178 + $0xa0] sm:$0xff] %v219
                %v221 = vld [vmem:[%s177 + $0x148] sm:$0xff]
                %222 = vst [vmem:[%s178 + $0xa8] sm:$0xff] %v221
                %v223 = vld [vmem:[%s177 + $0x160] sm:$0xff]
                %224 = vst [vmem:[%s178 + $0xb0] sm:$0xff] %v223
                %v225 = vld [vmem:[%s177 + $0x168] sm:$0xff]
                %226 = vst [vmem:[%s178 + $0xb8] sm:$0xff] %v225
                %v227 = vld [vmem:[%s177 + $0x180] sm:$0xff]
                %228 = vst [vmem:[%s178 + $0xc0] sm:$0xff] %v227
                %v229 = vld [vmem:[%s177 + $0x188] sm:$0xff]
                %230 = vst [vmem:[%s178 + $0xc8] sm:$0xff] %v229
                %v231 = vld [vmem:[%s177 + $0x1a0] sm:$0xff]
                %232 = vst [vmem:[%s178 + $0xd0] sm:$0xff] %v231
                %v233 = vld [vmem:[%s177 + $0x1a8] sm:$0xff]
                %234 = vst [vmem:[%s178 + $0xd8] sm:$0xff] %v233
                %v235 = vld [vmem:[%s177 + $0x1c0] sm:$0xff]
                %236 = vst [vmem:[%s178 + $0xe0] sm:$0xff] %v235
                %v237 = vld [vmem:[%s177 + $0x1c8] sm:$0xff]
                %238 = vst [vmem:[%s178 + $0xe8] sm:$0xff] %v237
                %v239 = vld [vmem:[%s177 + $0x1e0] sm:$0xff]
                %240 = vst [vmem:[%s178 + $0xf0] sm:$0xff] %v239
                %v241 = vld [vmem:[%s177 + $0x1e8] sm:$0xff]
                %242 = vst [vmem:[%s178 + $0xf8] sm:$0xff] %v241
                %v243 = vld [vmem:[%s177 + $0x200] sm:$0xff]
                %244 = vst [vmem:[%s178 + $0x100] sm:$0xff] %v243
                %v245 = vld [vmem:[%s177 + $0x208] sm:$0xff]
                %246 = vst [vmem:[%s178 + $0x108] sm:$0xff] %v245
                %v247 = vld [vmem:[%s177 + $0x220] sm:$0xff]
                %248 = vst [vmem:[%s178 + $0x110] sm:$0xff] %v247
                %v249 = vld [vmem:[%s177 + $0x228] sm:$0xff]
                %250 = vst [vmem:[%s178 + $0x118] sm:$0xff] %v249
                %v251 = vld [vmem:[%s177 + $0x240] sm:$0xff]
                %252 = vst [vmem:[%s178 + $0x120] sm:$0xff] %v251
                %v253 = vld [vmem:[%s177 + $0x248] sm:$0xff]
                %254 = vst [vmem:[%s178 + $0x128] sm:$0xff] %v253
                %v255 = vld [vmem:[%s177 + $0x260] sm:$0xff]
                %256 = vst [vmem:[%s178 + $0x130] sm:$0xff] %v255
                %v257 = vld [vmem:[%s177 + $0x268] sm:$0xff]
                %258 = vst [vmem:[%s178 + $0x138] sm:$0xff] %v257
                %v259 = vld [vmem:[%s177 + $0x280] sm:$0xff]
                %260 = vst [vmem:[%s178 + $0x140] sm:$0xff] %v259
                %v261 = vld [vmem:[%s177 + $0x288] sm:$0xff]
                %262 = vst [vmem:[%s178 + $0x148] sm:$0xff] %v261
                %v263 = vld [vmem:[%s177 + $0x2a0] sm:$0xff]
                %264 = vst [vmem:[%s178 + $0x150] sm:$0xff] %v263
                %v265 = vld [vmem:[%s177 + $0x2a8] sm:$0xff]
                %266 = vst [vmem:[%s178 + $0x158] sm:$0xff] %v265
                %v267 = vld [vmem:[%s177 + $0x2c0] sm:$0xff]
                %268 = vst [vmem:[%s178 + $0x160] sm:$0xff] %v267
                %v269 = vld [vmem:[%s177 + $0x2c8] sm:$0xff]
                %270 = vst [vmem:[%s178 + $0x168] sm:$0xff] %v269
                %v271 = vld [vmem:[%s177 + $0x2e0] sm:$0xff]
                %272 = vst [vmem:[%s178 + $0x170] sm:$0xff] %v271
                %v273 = vld [vmem:[%s177 + $0x2e8] sm:$0xff]
                %274 = vst [vmem:[%s178 + $0x178] sm:$0xff] %v273
                %v275 = vld [vmem:[%s177 + $0x300] sm:$0xff]
                %276 = vst [vmem:[%s178 + $0x180] sm:$0xff] %v275
                %v277 = vld [vmem:[%s177 + $0x308] sm:$0xff]
                %278 = vst [vmem:[%s178 + $0x188] sm:$0xff] %v277
                %v279 = vld [vmem:[%s177 + $0x320] sm:$0xff]
                %280 = vst [vmem:[%s178 + $0x190] sm:$0xff] %v279
                %v281 = vld [vmem:[%s177 + $0x328] sm:$0xff]
                %282 = vst [vmem:[%s178 + $0x198] sm:$0xff] %v281
                %v283 = vld [vmem:[%s177 + $0x340] sm:$0xff]
                %284 = vst [vmem:[%s178 + $0x1a0] sm:$0xff] %v283
                %v285 = vld [vmem:[%s177 + $0x348] sm:$0xff]
                %286 = vst [vmem:[%s178 + $0x1a8] sm:$0xff] %v285
                %v287 = vld [vmem:[%s177 + $0x360] sm:$0xff]
                %288 = vst [vmem:[%s178 + $0x1b0] sm:$0xff] %v287
                %v289 = vld [vmem:[%s177 + $0x368] sm:$0xff]
                %290 = vst [vmem:[%s178 + $0x1b8] sm:$0xff] %v289
                %v291 = vld [vmem:[%s177 + $0x380] sm:$0xff]
                %292 = vst [vmem:[%s178 + $0x1c0] sm:$0xff] %v291
                %v293 = vld [vmem:[%s177 + $0x388] sm:$0xff]
                %294 = vst [vmem:[%s178 + $0x1c8] sm:$0xff] %v293
                %v295 = vld [vmem:[%s177 + $0x3a0] sm:$0xff]
                %296 = vst [vmem:[%s178 + $0x1d0] sm:$0xff] %v295
                %v297 = vld [vmem:[%s177 + $0x3a8] sm:$0xff]
                %298 = vst [vmem:[%s178 + $0x1d8] sm:$0xff] %v297
                %v299 = vld [vmem:[%s177 + $0x3c0] sm:$0xff]
                %300 = vst [vmem:[%s178 + $0x1e0] sm:$0xff] %v299
                %v301 = vld [vmem:[%s177 + $0x3c8] sm:$0xff]
                %302 = vst [vmem:[%s178 + $0x1e8] sm:$0xff] %v301
                %v303 = vld [vmem:[%s177 + $0x3e0] sm:$0xff]
                %304 = vst [vmem:[%s178 + $0x1f0] sm:$0xff] %v303
                %v305 = vld [vmem:[%s177 + $0x3e8] sm:$0xff]
                %306 = vst [vmem:[%s178 + $0x1f8] sm:$0xff] %v305
              $region37: #{feedforward_pallas.1} parent=31 // loop_footer
                %s176 = sadd.s32 1, %s172
              $region38: #{feedforward_pallas.1} parent=31 // loop_footer_branch
                %171 = sbr.rel target = $region34
              $region39: #{feedforward_pallas.1} parent=31 // loop_exit
                _
            $region32: #{feedforward_pallas.1} parent=27 // pred_fallthru
              _
            // Predicated region
            $region40: #{feedforward_pallas.1} parent=27 // pred_check
              _
            $region41: #{feedforward_pallas.1} parent=27 // pred_check_branch
              %308 = sbr.rel target = $region43
            $region42: #{feedforward_pallas.1} parent=27 // pred_region
              _
            $region43: #{feedforward_pallas.1} parent=27 // pred_fallthru
              _
          $region28: #{feedforward_pallas.1} parent=23 // pred_fallthru
            _
          %309 = vnop
        $region24: #{feedforward_pallas.1} parent=15 // pred_fallthru
          _
        // Predicated region
        $region44: #{feedforward_pallas.1} parent=15 // pred_check
          %p310 = pneg %p96
        $region45: #{feedforward_pallas.1} parent=15 // pred_check_branch
          %312 = sbr.rel (%p310) target = $region47
        $region46: #{feedforward_pallas.1} parent=15 // pred_region
          %s313 = smul.u32 32, %s20
          %p314 = scmp.lt.s32.totalorder %s313, 63
          %s315 = scalar_select %p314, %s313, 63
          %s316 = smul.addr %s315, 2
          %s317 = smul.addr %s316, 4
          %s318 = scalar_lea.vmem %s2, %s317
          %s319 = smul.u32 32, %s20
        $region47: #{feedforward_pallas.1} parent=15 // pred_fallthru
          _
      $region16: #{feedforward_pallas.1} parent=5 // pred_fallthru
        _
      %p320 = scmp.le.s32.totalorder 1, %s12
      %p321 = scmp.lt.s32.totalorder %s12, 5
      %p322 = pnand %p320, %p321
      %p323 = pneg %p322
      // Predicated region
      $region48: #{feedforward_pallas.1} parent=5 // pred_check
        _
      $region49: #{feedforward_pallas.1} parent=5 // pred_check_branch
        %325 = sbr.rel (%p322) target = $region51
      $region50: #{feedforward_pallas.1} parent=5 // pred_region
        %s326 = ssub.s32 %s12, 1
        %s327 = sand.u32 %s63, 1
        %s328 = sand.u32 %s63, 1
        %s329 = smul.addr %s328, 512
        %s330 = scalar_lea.vmem [#allocation2], %s329
        // Predicated region
        $region52: #{feedforward_pallas.1} parent=50 // pred_check
          %p331 = pneg %p76
        $region53: #{feedforward_pallas.1} parent=50 // pred_check_branch
          %333 = sbr.rel (%p331) target = $region55
        $region54: #{feedforward_pallas.1} parent=50 // pred_region
          _
        $region55: #{feedforward_pallas.1} parent=50 // pred_fallthru
          _
        %s334 = smul.u32 32, %s21
        %p335 = scmp.lt.s32.totalorder %s334, 63
        %s336 = scalar_select %p335, %s334, 63
        %s337 = smul.addr %s336, 2
        %s338 = smul.addr %s337, 4
        %s339 = scalar_lea.vmem %s0, %s338
        %p340 = pneg %p50
        %p341 = pneg %p47
        %s342 = sand.u32 %s63, 1
        %s343 = sand.u32 %s63, 1
        %s344 = smul.addr %s343, 512
        %s345 = scalar_lea.vmem [#allocation2], %s344
        %p346 = pneg %p76
        %p347 = pneg %p73
        %s348 = smul.u32 32, %s22
        %p349 = scmp.lt.s32.totalorder %s348, 63
        %s350 = scalar_select %p349, %s348, 63
        %s351 = smul.addr %s350, 2
        %s352 = smul.addr %s351, 4
        %s353 = scalar_lea.vmem %s2, %s352
        %p354 = pneg %p102
        %p355 = pneg %p99
        %p356 = pneg %p128
        %p357 = pneg %p125
        %s358 = sand.u32 %s115, 1
        %s359 = scalar_lea.sflag [#allocation4], %s358
        %s360 = sand.u32 %s115, 1
        %s361 = smul.addr %s360, 512
        %s362 = scalar_lea.vmem [#allocation3], %s361
        %s363 = smul.u32 32, %s21
        %p364 = scmp.lt.s32.totalorder %s363, 63
        %s365 = scalar_select %p364, %s363, 63
        %s366 = smul.addr %s365, 2
        %s367 = smul.addr %s366, 4
        %s368 = scalar_lea.vmem %s0, %s367
        %s369 = smul.u32 32, %s21
        %s370 = smul.u32 4, %s22
        %s371 = smul.u32 32, %s22
        %p372 = scmp.lt.s32.totalorder %s371, 63
        %s373 = scalar_select %p372, %s371, 63
        %s374 = smul.addr %s373, 2
        %s375 = smul.addr %s374, 4
        %s376 = scalar_lea.vmem %s2, %s375
        %s377 = smul.u32 32, %s22
        %s378 = smul.u32 32, %s21
        %p379 = scmp.eq.s32.totalorder %s22, 0
        // Predicated region
        $region56: #{feedforward_pallas.1} parent=50 // pred_check
          %p380 = pneg %p379
        $region57: #{feedforward_pallas.1} parent=50 // pred_check_branch
          %382 = sbr.rel (%p380) target = $region59
        $region58: #{feedforward_pallas.1} parent=50 // pred_region
          %383 = vst [vmem:[%s362] sm:$0xff] 0.0
          %384 = vst [vmem:[%s362 + $0x8] sm:$0xff] 0.0
          %385 = vst [vmem:[%s362 + $0x10] sm:$0xff] 0.0
          %386 = vst [vmem:[%s362 + $0x18] sm:$0xff] 0.0
          %387 = vst [vmem:[%s362 + $0x20] sm:$0xff] 0.0
          %388 = vst [vmem:[%s362 + $0x28] sm:$0xff] 0.0
          %389 = vst [vmem:[%s362 + $0x30] sm:$0xff] 0.0
          %390 = vst [vmem:[%s362 + $0x38] sm:$0xff] 0.0
          %391 = vst [vmem:[%s362 + $0x40] sm:$0xff] 0.0
          %392 = vst [vmem:[%s362 + $0x48] sm:$0xff] 0.0
          %393 = vst [vmem:[%s362 + $0x50] sm:$0xff] 0.0
          %394 = vst [vmem:[%s362 + $0x58] sm:$0xff] 0.0
          %395 = vst [vmem:[%s362 + $0x60] sm:$0xff] 0.0
          %396 = vst [vmem:[%s362 + $0x68] sm:$0xff] 0.0
          %397 = vst [vmem:[%s362 + $0x70] sm:$0xff] 0.0
          %398 = vst [vmem:[%s362 + $0x78] sm:$0xff] 0.0
          %399 = vst [vmem:[%s362 + $0x80] sm:$0xff] 0.0
          %400 = vst [vmem:[%s362 + $0x88] sm:$0xff] 0.0
          %401 = vst [vmem:[%s362 + $0x90] sm:$0xff] 0.0
          %402 = vst [vmem:[%s362 + $0x98] sm:$0xff] 0.0
          %403 = vst [vmem:[%s362 + $0xa0] sm:$0xff] 0.0
          %404 = vst [vmem:[%s362 + $0xa8] sm:$0xff] 0.0
          %405 = vst [vmem:[%s362 + $0xb0] sm:$0xff] 0.0
          %406 = vst [vmem:[%s362 + $0xb8] sm:$0xff] 0.0
          %407 = vst [vmem:[%s362 + $0xc0] sm:$0xff] 0.0
          %408 = vst [vmem:[%s362 + $0xc8] sm:$0xff] 0.0
          %409 = vst [vmem:[%s362 + $0xd0] sm:$0xff] 0.0
          %410 = vst [vmem:[%s362 + $0xd8] sm:$0xff] 0.0
          %411 = vst [vmem:[%s362 + $0xe0] sm:$0xff] 0.0
          %412 = vst [vmem:[%s362 + $0xe8] sm:$0xff] 0.0
          %413 = vst [vmem:[%s362 + $0xf0] sm:$0xff] 0.0
          %414 = vst [vmem:[%s362 + $0xf8] sm:$0xff] 0.0
          %415 = vst [vmem:[%s362 + $0x100] sm:$0xff] 0.0
          %416 = vst [vmem:[%s362 + $0x108] sm:$0xff] 0.0
          %417 = vst [vmem:[%s362 + $0x110] sm:$0xff] 0.0
          %418 = vst [vmem:[%s362 + $0x118] sm:$0xff] 0.0
          %419 = vst [vmem:[%s362 + $0x120] sm:$0xff] 0.0
          %420 = vst [vmem:[%s362 + $0x128] sm:$0xff] 0.0
          %421 = vst [vmem:[%s362 + $0x130] sm:$0xff] 0.0
          %422 = vst [vmem:[%s362 + $0x138] sm:$0xff] 0.0
          %423 = vst [vmem:[%s362 + $0x140] sm:$0xff] 0.0
          %424 = vst [vmem:[%s362 + $0x148] sm:$0xff] 0.0
          %425 = vst [vmem:[%s362 + $0x150] sm:$0xff] 0.0
          %426 = vst [vmem:[%s362 + $0x158] sm:$0xff] 0.0
          %427 = vst [vmem:[%s362 + $0x160] sm:$0xff] 0.0
          %428 = vst [vmem:[%s362 + $0x168] sm:$0xff] 0.0
          %429 = vst [vmem:[%s362 + $0x170] sm:$0xff] 0.0
          %430 = vst [vmem:[%s362 + $0x178] sm:$0xff] 0.0
          %431 = vst [vmem:[%s362 + $0x180] sm:$0xff] 0.0
          %432 = vst [vmem:[%s362 + $0x188] sm:$0xff] 0.0
          %433 = vst [vmem:[%s362 + $0x190] sm:$0xff] 0.0
          %434 = vst [vmem:[%s362 + $0x198] sm:$0xff] 0.0
          %435 = vst [vmem:[%s362 + $0x1a0] sm:$0xff] 0.0
          %436 = vst [vmem:[%s362 + $0x1a8] sm:$0xff] 0.0
          %437 = vst [vmem:[%s362 + $0x1b0] sm:$0xff] 0.0
          %438 = vst [vmem:[%s362 + $0x1b8] sm:$0xff] 0.0
          %439 = vst [vmem:[%s362 + $0x1c0] sm:$0xff] 0.0
          %440 = vst [vmem:[%s362 + $0x1c8] sm:$0xff] 0.0
          %441 = vst [vmem:[%s362 + $0x1d0] sm:$0xff] 0.0
          %442 = vst [vmem:[%s362 + $0x1d8] sm:$0xff] 0.0
          %443 = vst [vmem:[%s362 + $0x1e0] sm:$0xff] 0.0
          %444 = vst [vmem:[%s362 + $0x1e8] sm:$0xff] 0.0
          %445 = vst [vmem:[%s362 + $0x1f0] sm:$0xff] 0.0
          %446 = vst [vmem:[%s362 + $0x1f8] sm:$0xff] 0.0
        $region59: #{feedforward_pallas.1} parent=50 // pred_fallthru
          _
        %v447 = vld [vmem:[%s362] sm:$0xff]
        %v448 = vld [vmem:[%s362 + $0x8] sm:$0xff]
        %v449 = vld [vmem:[%s362 + $0x10] sm:$0xff]
        %v450 = vld [vmem:[%s362 + $0x18] sm:$0xff]
        %v451 = vld [vmem:[%s362 + $0x20] sm:$0xff]
        %v452 = vld [vmem:[%s362 + $0x28] sm:$0xff]
        %v453 = vld [vmem:[%s362 + $0x30] sm:$0xff]
        %v454 = vld [vmem:[%s362 + $0x38] sm:$0xff]
        %v455 = vld [vmem:[%s362 + $0x40] sm:$0xff]
        %v456 = vld [vmem:[%s362 + $0x48] sm:$0xff]
        %v457 = vld [vmem:[%s362 + $0x50] sm:$0xff]
        %v458 = vld [vmem:[%s362 + $0x58] sm:$0xff]
        %v459 = vld [vmem:[%s362 + $0x60] sm:$0xff]
        %v460 = vld [vmem:[%s362 + $0x68] sm:$0xff]
        %v461 = vld [vmem:[%s362 + $0x70] sm:$0xff]
        %v462 = vld [vmem:[%s362 + $0x78] sm:$0xff]
        %v463 = vld [vmem:[%s362 + $0x80] sm:$0xff]
        %v464 = vld [vmem:[%s362 + $0x88] sm:$0xff]
        %v465 = vld [vmem:[%s362 + $0x90] sm:$0xff]
        %v466 = vld [vmem:[%s362 + $0x98] sm:$0xff]
        %v467 = vld [vmem:[%s362 + $0xa0] sm:$0xff]
        %v468 = vld [vmem:[%s362 + $0xa8] sm:$0xff]
        %v469 = vld [vmem:[%s362 + $0xb0] sm:$0xff]
        %v470 = vld [vmem:[%s362 + $0xb8] sm:$0xff]
        %v471 = vld [vmem:[%s362 + $0xc0] sm:$0xff]
        %v472 = vld [vmem:[%s362 + $0xc8] sm:$0xff]
        %v473 = vld [vmem:[%s362 + $0xd0] sm:$0xff]
        %v474 = vld [vmem:[%s362 + $0xd8] sm:$0xff]
        %v475 = vld [vmem:[%s362 + $0xe0] sm:$0xff]
        %v476 = vld [vmem:[%s362 + $0xe8] sm:$0xff]
        %v477 = vld [vmem:[%s362 + $0xf0] sm:$0xff]
        %v478 = vld [vmem:[%s362 + $0xf8] sm:$0xff]
        %v479 = vld [vmem:[%s362 + $0x100] sm:$0xff]
        %v480 = vld [vmem:[%s362 + $0x108] sm:$0xff]
        %v481 = vld [vmem:[%s362 + $0x110] sm:$0xff]
        %v482 = vld [vmem:[%s362 + $0x118] sm:$0xff]
        %v483 = vld [vmem:[%s362 + $0x120] sm:$0xff]
        %v484 = vld [vmem:[%s362 + $0x128] sm:$0xff]
        %v485 = vld [vmem:[%s362 + $0x130] sm:$0xff]
        %v486 = vld [vmem:[%s362 + $0x138] sm:$0xff]
        %v487 = vld [vmem:[%s362 + $0x140] sm:$0xff]
        %v488 = vld [vmem:[%s362 + $0x148] sm:$0xff]
        %v489 = vld [vmem:[%s362 + $0x150] sm:$0xff]
        %v490 = vld [vmem:[%s362 + $0x158] sm:$0xff]
        %v491 = vld [vmem:[%s362 + $0x160] sm:$0xff]
        %v492 = vld [vmem:[%s362 + $0x168] sm:$0xff]
        %v493 = vld [vmem:[%s362 + $0x170] sm:$0xff]
        %v494 = vld [vmem:[%s362 + $0x178] sm:$0xff]
        %v495 = vld [vmem:[%s362 + $0x180] sm:$0xff]
        %v496 = vld [vmem:[%s362 + $0x188] sm:$0xff]
        %v497 = vld [vmem:[%s362 + $0x190] sm:$0xff]
        %v498 = vld [vmem:[%s362 + $0x198] sm:$0xff]
        %v499 = vld [vmem:[%s362 + $0x1a0] sm:$0xff]
        %v500 = vld [vmem:[%s362 + $0x1a8] sm:$0xff]
        %v501 = vld [vmem:[%s362 + $0x1b0] sm:$0xff]
        %v502 = vld [vmem:[%s362 + $0x1b8] sm:$0xff]
        %v503 = vld [vmem:[%s362 + $0x1c0] sm:$0xff]
        %v504 = vld [vmem:[%s362 + $0x1c8] sm:$0xff]
        %v505 = vld [vmem:[%s362 + $0x1d0] sm:$0xff]
        %v506 = vld [vmem:[%s362 + $0x1d8] sm:$0xff]
        %v507 = vld [vmem:[%s362 + $0x1e0] sm:$0xff]
        %v508 = vld [vmem:[%s362 + $0x1e8] sm:$0xff]
        %v509 = vld [vmem:[%s362 + $0x1f0] sm:$0xff]
        %v510 = vld [vmem:[%s362 + $0x1f8] sm:$0xff]
        %v511 = vld [vmem:[%s368] sm:$0xff]
        %v512 = vld [vmem:[%s368 + $0x8] sm:$0xff]
        %v513 = vld [vmem:[%s368 + $0x10] sm:$0xff]
        %v514 = vld [vmem:[%s368 + $0x18] sm:$0xff]
        %v515 = vld [vmem:[%s368 + $0x20] sm:$0xff]
        %v516 = vld [vmem:[%s368 + $0x28] sm:$0xff]
        %v517 = vld [vmem:[%s368 + $0x30] sm:$0xff]
        %v518 = vld [vmem:[%s368 + $0x38] sm:$0xff]
        %v519 = vld [vmem:[%s368 + $0x40] sm:$0xff]
        %v520 = vld [vmem:[%s368 + $0x48] sm:$0xff]
        %v521 = vld [vmem:[%s368 + $0x50] sm:$0xff]
        %v522 = vld [vmem:[%s368 + $0x58] sm:$0xff]
        %v523 = vld [vmem:[%s368 + $0x60] sm:$0xff]
        %v524 = vld [vmem:[%s368 + $0x68] sm:$0xff]
        %v525 = vld [vmem:[%s368 + $0x70] sm:$0xff]
        %v526 = vld [vmem:[%s368 + $0x78] sm:$0xff]
        %v527 = vld [vmem:[%s368 + $0x80] sm:$0xff]
        %v528 = vld [vmem:[%s368 + $0x88] sm:$0xff]
        %v529 = vld [vmem:[%s368 + $0x90] sm:$0xff]
        %v530 = vld [vmem:[%s368 + $0x98] sm:$0xff]
        %v531 = vld [vmem:[%s368 + $0xa0] sm:$0xff]
        %v532 = vld [vmem:[%s368 + $0xa8] sm:$0xff]
        %v533 = vld [vmem:[%s368 + $0xb0] sm:$0xff]
        %v534 = vld [vmem:[%s368 + $0xb8] sm:$0xff]
        %v535 = vld [vmem:[%s368 + $0xc0] sm:$0xff]
        %v536 = vld [vmem:[%s368 + $0xc8] sm:$0xff]
        %v537 = vld [vmem:[%s368 + $0xd0] sm:$0xff]
        %v538 = vld [vmem:[%s368 + $0xd8] sm:$0xff]
        %v539 = vld [vmem:[%s368 + $0xe0] sm:$0xff]
        %v540 = vld [vmem:[%s368 + $0xe8] sm:$0xff]
        %v541 = vld [vmem:[%s368 + $0xf0] sm:$0xff]
        %v542 = vld [vmem:[%s368 + $0xf8] sm:$0xff]
        %v543 = vld [vmem:[%s330] sm:$0xff]
        %v544 = vld [vmem:[%s330 + $0x8] sm:$0xff]
        %v545 = vld [vmem:[%s330 + $0x10] sm:$0xff]
        %v546 = vld [vmem:[%s330 + $0x18] sm:$0xff]
        %v547 = vld [vmem:[%s330 + $0x20] sm:$0xff]
        %v548 = vld [vmem:[%s330 + $0x28] sm:$0xff]
        %v549 = vld [vmem:[%s330 + $0x30] sm:$0xff]
        %v550 = vld [vmem:[%s330 + $0x38] sm:$0xff]
        %v551 = vld [vmem:[%s330 + $0x40] sm:$0xff]
        %v552 = vld [vmem:[%s330 + $0x48] sm:$0xff]
        %v553 = vld [vmem:[%s330 + $0x50] sm:$0xff]
        %v554 = vld [vmem:[%s330 + $0x58] sm:$0xff]
        %v555 = vld [vmem:[%s330 + $0x60] sm:$0xff]
        %v556 = vld [vmem:[%s330 + $0x68] sm:$0xff]
        %v557 = vld [vmem:[%s330 + $0x70] sm:$0xff]
        %v558 = vld [vmem:[%s330 + $0x78] sm:$0xff]
        %v559 = vld [vmem:[%s330 + $0x80] sm:$0xff]
        %v560 = vld [vmem:[%s330 + $0x88] sm:$0xff]
        %v561 = vld [vmem:[%s330 + $0x90] sm:$0xff]
        %v562 = vld [vmem:[%s330 + $0x98] sm:$0xff]
        %v563 = vld [vmem:[%s330 + $0xa0] sm:$0xff]
        %v564 = vld [vmem:[%s330 + $0xa8] sm:$0xff]
        %v565 = vld [vmem:[%s330 + $0xb0] sm:$0xff]
        %v566 = vld [vmem:[%s330 + $0xb8] sm:$0xff]
        %v567 = vld [vmem:[%s330 + $0xc0] sm:$0xff]
        %v568 = vld [vmem:[%s330 + $0xc8] sm:$0xff]
        %v569 = vld [vmem:[%s330 + $0xd0] sm:$0xff]
        %v570 = vld [vmem:[%s330 + $0xd8] sm:$0xff]
        %v571 = vld [vmem:[%s330 + $0xe0] sm:$0xff]
        %v572 = vld [vmem:[%s330 + $0xe8] sm:$0xff]
        %v573 = vld [vmem:[%s330 + $0xf0] sm:$0xff]
        %v574 = vld [vmem:[%s330 + $0xf8] sm:$0xff]
        %v575 = vld [vmem:[%s330 + $0x100] sm:$0xff]
        %v576 = vld [vmem:[%s330 + $0x108] sm:$0xff]
        %v577 = vld [vmem:[%s330 + $0x110] sm:$0xff]
        %v578 = vld [vmem:[%s330 + $0x118] sm:$0xff]
        %v579 = vld [vmem:[%s330 + $0x120] sm:$0xff]
        %v580 = vld [vmem:[%s330 + $0x128] sm:$0xff]
        %v581 = vld [vmem:[%s330 + $0x130] sm:$0xff]
        %v582 = vld [vmem:[%s330 + $0x138] sm:$0xff]
        %v583 = vld [vmem:[%s330 + $0x140] sm:$0xff]
        %v584 = vld [vmem:[%s330 + $0x148] sm:$0xff]
        %v585 = vld [vmem:[%s330 + $0x150] sm:$0xff]
        %v586 = vld [vmem:[%s330 + $0x158] sm:$0xff]
        %v587 = vld [vmem:[%s330 + $0x160] sm:$0xff]
        %v588 = vld [vmem:[%s330 + $0x168] sm:$0xff]
        %v589 = vld [vmem:[%s330 + $0x170] sm:$0xff]
        %v590 = vld [vmem:[%s330 + $0x178] sm:$0xff]
        %v591 = vld [vmem:[%s330 + $0x180] sm:$0xff]
        %v592 = vld [vmem:[%s330 + $0x188] sm:$0xff]
        %v593 = vld [vmem:[%s330 + $0x190] sm:$0xff]
        %v594 = vld [vmem:[%s330 + $0x198] sm:$0xff]
        %v595 = vld [vmem:[%s330 + $0x1a0] sm:$0xff]
        %v596 = vld [vmem:[%s330 + $0x1a8] sm:$0xff]
        %v597 = vld [vmem:[%s330 + $0x1b0] sm:$0xff]
        %v598 = vld [vmem:[%s330 + $0x1b8] sm:$0xff]
        %v599 = vld [vmem:[%s330 + $0x1c0] sm:$0xff]
        %v600 = vld [vmem:[%s330 + $0x1c8] sm:$0xff]
        %v601 = vld [vmem:[%s330 + $0x1d0] sm:$0xff]
        %v602 = vld [vmem:[%s330 + $0x1d8] sm:$0xff]
        %v603 = vld [vmem:[%s330 + $0x1e0] sm:$0xff]
        %v604 = vld [vmem:[%s330 + $0x1e8] sm:$0xff]
        %v605 = vld [vmem:[%s330 + $0x1f0] sm:$0xff]
        %v606 = vld [vmem:[%s330 + $0x1f8] sm:$0xff]
        %v639 = vunpack.c.l.b16 %v511
        %v640 = vunpack.c.h.b16 %v511
        %v641 = vunpack.c.l.b16 %v512
        %v642 = vunpack.c.h.b16 %v512
        %v643 = vunpack.c.l.b16 %v513
        %v644 = vunpack.c.h.b16 %v513
        %v645 = vunpack.c.l.b16 %v514
        %v646 = vunpack.c.h.b16 %v514
        %v647 = vunpack.c.l.b16 %v515
        %v648 = vunpack.c.h.b16 %v515
        %v649 = vunpack.c.l.b16 %v516
        %v650 = vunpack.c.h.b16 %v516
        %v651 = vunpack.c.l.b16 %v517
        %v652 = vunpack.c.h.b16 %v517
        %v653 = vunpack.c.l.b16 %v518
        %v654 = vunpack.c.h.b16 %v518
        %v655 = vunpack.c.l.b16 %v519
        %v656 = vunpack.c.h.b16 %v519
        %v657 = vunpack.c.l.b16 %v520
        %v658 = vunpack.c.h.b16 %v520
        %v659 = vunpack.c.l.b16 %v521
        %v660 = vunpack.c.h.b16 %v521
        %v661 = vunpack.c.l.b16 %v522
        %v662 = vunpack.c.h.b16 %v522
        %v663 = vunpack.c.l.b16 %v523
        %v664 = vunpack.c.h.b16 %v523
        %v665 = vunpack.c.l.b16 %v524
        %v666 = vunpack.c.h.b16 %v524
        %v667 = vunpack.c.l.b16 %v525
        %v668 = vunpack.c.h.b16 %v525
        %v669 = vunpack.c.l.b16 %v526
        %v670 = vunpack.c.h.b16 %v526
        %v671 = vunpack.c.l.b16 %v527
        %v672 = vunpack.c.h.b16 %v527
        %v673 = vunpack.c.l.b16 %v528
        %v674 = vunpack.c.h.b16 %v528
        %v675 = vunpack.c.l.b16 %v529
        %v676 = vunpack.c.h.b16 %v529
        %v677 = vunpack.c.l.b16 %v530
        %v678 = vunpack.c.h.b16 %v530
        %v679 = vunpack.c.l.b16 %v531
        %v680 = vunpack.c.h.b16 %v531
        %v681 = vunpack.c.l.b16 %v532
        %v682 = vunpack.c.h.b16 %v532
        %v683 = vunpack.c.l.b16 %v533
        %v684 = vunpack.c.h.b16 %v533
        %v685 = vunpack.c.l.b16 %v534
        %v686 = vunpack.c.h.b16 %v534
        %v687 = vunpack.c.l.b16 %v535
        %v688 = vunpack.c.h.b16 %v535
        %v689 = vunpack.c.l.b16 %v536
        %v690 = vunpack.c.h.b16 %v536
        %v691 = vunpack.c.l.b16 %v537
        %v692 = vunpack.c.h.b16 %v537
        %v693 = vunpack.c.l.b16 %v538
        %v694 = vunpack.c.h.b16 %v538
        %v695 = vunpack.c.l.b16 %v539
        %v696 = vunpack.c.h.b16 %v539
        %v697 = vunpack.c.l.b16 %v540
        %v698 = vunpack.c.h.b16 %v540
        %v699 = vunpack.c.l.b16 %v541
        %v700 = vunpack.c.h.b16 %v541
        %v701 = vunpack.c.l.b16 %v542
        %v702 = vunpack.c.h.b16 %v542
        %v703 = vpack.c.b16 %v641, %v639
        %v704 = vpack.c.b16 %v642, %v640
        %v705 = vpack.c.b16 %v645, %v643
        %v706 = vpack.c.b16 %v646, %v644
        %v707 = vpack.c.b16 %v649, %v647
        %v708 = vpack.c.b16 %v650, %v648
        %v709 = vpack.c.b16 %v653, %v651
        %v710 = vpack.c.b16 %v654, %v652
        %v711 = vpack.c.b16 %v657, %v655
        %v712 = vpack.c.b16 %v658, %v656
        %v713 = vpack.c.b16 %v661, %v659
        %v714 = vpack.c.b16 %v662, %v660
        %v715 = vpack.c.b16 %v665, %v663
        %v716 = vpack.c.b16 %v666, %v664
        %v717 = vpack.c.b16 %v669, %v667
        %v718 = vpack.c.b16 %v670, %v668
        %v719 = vpack.c.b16 %v673, %v671
        %v720 = vpack.c.b16 %v674, %v672
        %v721 = vpack.c.b16 %v677, %v675
        %v722 = vpack.c.b16 %v678, %v676
        %v723 = vpack.c.b16 %v681, %v679
        %v724 = vpack.c.b16 %v682, %v680
        %v725 = vpack.c.b16 %v685, %v683
        %v726 = vpack.c.b16 %v686, %v684
        %v727 = vpack.c.b16 %v689, %v687
        %v728 = vpack.c.b16 %v690, %v688
        %v729 = vpack.c.b16 %v693, %v691
        %v730 = vpack.c.b16 %v694, %v692
        %v731 = vpack.c.b16 %v697, %v695
        %v732 = vpack.c.b16 %v698, %v696
        %v733 = vpack.c.b16 %v701, %v699
        %v734 = vpack.c.b16 %v702, %v700
        %v831 = vunpack.c.l.b16 %v543
        %v832 = vunpack.c.h.b16 %v543
        %v833 = vunpack.c.l.b16 %v544
        %v834 = vunpack.c.h.b16 %v544
        %v835 = vunpack.c.l.b16 %v545
        %v836 = vunpack.c.h.b16 %v545
        %v837 = vunpack.c.l.b16 %v546
        %v838 = vunpack.c.h.b16 %v546
        %v839 = vunpack.c.l.b16 %v547
        %v840 = vunpack.c.h.b16 %v547
        %v841 = vunpack.c.l.b16 %v548
        %v842 = vunpack.c.h.b16 %v548
        %v843 = vunpack.c.l.b16 %v549
        %v844 = vunpack.c.h.b16 %v549
        %v845 = vunpack.c.l.b16 %v550
        %v846 = vunpack.c.h.b16 %v550
        %v847 = vunpack.c.l.b16 %v551
        %v848 = vunpack.c.h.b16 %v551
        %v849 = vunpack.c.l.b16 %v552
        %v850 = vunpack.c.h.b16 %v552
        %v851 = vunpack.c.l.b16 %v553
        %v852 = vunpack.c.h.b16 %v553
        %v853 = vunpack.c.l.b16 %v554
        %v854 = vunpack.c.h.b16 %v554
        %v855 = vunpack.c.l.b16 %v555
        %v856 = vunpack.c.h.b16 %v555
        %v857 = vunpack.c.l.b16 %v556
        %v858 = vunpack.c.h.b16 %v556
        %v859 = vunpack.c.l.b16 %v557
        %v860 = vunpack.c.h.b16 %v557
        %v861 = vunpack.c.l.b16 %v558
        %v862 = vunpack.c.h.b16 %v558
        %v863 = vunpack.c.l.b16 %v559
        %v864 = vunpack.c.h.b16 %v559
        %v865 = vunpack.c.l.b16 %v560
        %v866 = vunpack.c.h.b16 %v560
        %v867 = vunpack.c.l.b16 %v561
        %v868 = vunpack.c.h.b16 %v561
        %v869 = vunpack.c.l.b16 %v562
        %v870 = vunpack.c.h.b16 %v562
        %v871 = vunpack.c.l.b16 %v563
        %v872 = vunpack.c.h.b16 %v563
        %v873 = vunpack.c.l.b16 %v564
        %v874 = vunpack.c.h.b16 %v564
        %v875 = vunpack.c.l.b16 %v565
        %v876 = vunpack.c.h.b16 %v565
        %v877 = vunpack.c.l.b16 %v566
        %v878 = vunpack.c.h.b16 %v566
        %v879 = vunpack.c.l.b16 %v567
        %v880 = vunpack.c.h.b16 %v567
        %v881 = vunpack.c.l.b16 %v568
        %v882 = vunpack.c.h.b16 %v568
        %v883 = vunpack.c.l.b16 %v569
        %v884 = vunpack.c.h.b16 %v569
        %v885 = vunpack.c.l.b16 %v570
        %v886 = vunpack.c.h.b16 %v570
        %v887 = vunpack.c.l.b16 %v571
        %v888 = vunpack.c.h.b16 %v571
        %v889 = vunpack.c.l.b16 %v572
        %v890 = vunpack.c.h.b16 %v572
        %v891 = vunpack.c.l.b16 %v573
        %v892 = vunpack.c.h.b16 %v573
        %v893 = vunpack.c.l.b16 %v574
        %v894 = vunpack.c.h.b16 %v574
        %v895 = vunpack.c.l.b16 %v575
        %v896 = vunpack.c.h.b16 %v575
        %v897 = vunpack.c.l.b16 %v576
        %v898 = vunpack.c.h.b16 %v576
        %v899 = vunpack.c.l.b16 %v577
        %v900 = vunpack.c.h.b16 %v577
        %v901 = vunpack.c.l.b16 %v578
        %v902 = vunpack.c.h.b16 %v578
        %v903 = vunpack.c.l.b16 %v579
        %v904 = vunpack.c.h.b16 %v579
        %v905 = vunpack.c.l.b16 %v580
        %v906 = vunpack.c.h.b16 %v580
        %v907 = vunpack.c.l.b16 %v581
        %v908 = vunpack.c.h.b16 %v581
        %v909 = vunpack.c.l.b16 %v582
        %v910 = vunpack.c.h.b16 %v582
        %v911 = vunpack.c.l.b16 %v583
        %v912 = vunpack.c.h.b16 %v583
        %v913 = vunpack.c.l.b16 %v584
        %v914 = vunpack.c.h.b16 %v584
        %v915 = vunpack.c.l.b16 %v585
        %v916 = vunpack.c.h.b16 %v585
        %v917 = vunpack.c.l.b16 %v586
        %v918 = vunpack.c.h.b16 %v586
        %v919 = vunpack.c.l.b16 %v587
        %v920 = vunpack.c.h.b16 %v587
        %v921 = vunpack.c.l.b16 %v588
        %v922 = vunpack.c.h.b16 %v588
        %v923 = vunpack.c.l.b16 %v589
        %v924 = vunpack.c.h.b16 %v589
        %v925 = vunpack.c.l.b16 %v590
        %v926 = vunpack.c.h.b16 %v590
        %v927 = vunpack.c.l.b16 %v591
        %v928 = vunpack.c.h.b16 %v591
        %v929 = vunpack.c.l.b16 %v592
        %v930 = vunpack.c.h.b16 %v592
        %v931 = vunpack.c.l.b16 %v593
        %v932 = vunpack.c.h.b16 %v593
        %v933 = vunpack.c.l.b16 %v594
        %v934 = vunpack.c.h.b16 %v594
        %v935 = vunpack.c.l.b16 %v595
        %v936 = vunpack.c.h.b16 %v595
        %v937 = vunpack.c.l.b16 %v596
        %v938 = vunpack.c.h.b16 %v596
        %v939 = vunpack.c.l.b16 %v597
        %v940 = vunpack.c.h.b16 %v597
        %v941 = vunpack.c.l.b16 %v598
        %v942 = vunpack.c.h.b16 %v598
        %v943 = vunpack.c.l.b16 %v599
        %v944 = vunpack.c.h.b16 %v599
        %v945 = vunpack.c.l.b16 %v600
        %v946 = vunpack.c.h.b16 %v600
        %v947 = vunpack.c.l.b16 %v601
        %v948 = vunpack.c.h.b16 %v601
        %v949 = vunpack.c.l.b16 %v602
        %v950 = vunpack.c.h.b16 %v602
        %v951 = vunpack.c.l.b16 %v603
        %v952 = vunpack.c.h.b16 %v603
        %v953 = vunpack.c.l.b16 %v604
        %v954 = vunpack.c.h.b16 %v604
        %v955 = vunpack.c.l.b16 %v605
        %v956 = vunpack.c.h.b16 %v605
        %v957 = vunpack.c.l.b16 %v606
        %v958 = vunpack.c.h.b16 %v606
        %v959 = vpack.c.b16 %v835, %v831
        %v960 = vpack.c.b16 %v836, %v832
        %v961 = vpack.c.b16 %v837, %v833
        %v962 = vpack.c.b16 %v838, %v834
        %v963 = vpack.c.b16 %v843, %v839
        %v964 = vpack.c.b16 %v844, %v840
        %v965 = vpack.c.b16 %v845, %v841
        %v966 = vpack.c.b16 %v846, %v842
        %v967 = vpack.c.b16 %v851, %v847
        %v968 = vpack.c.b16 %v852, %v848
        %v969 = vpack.c.b16 %v853, %v849
        %v970 = vpack.c.b16 %v854, %v850
        %v971 = vpack.c.b16 %v859, %v855
        %v972 = vpack.c.b16 %v860, %v856
        %v973 = vpack.c.b16 %v861, %v857
        %v974 = vpack.c.b16 %v862, %v858
        %v975 = vpack.c.b16 %v867, %v863
        %v976 = vpack.c.b16 %v868, %v864
        %v977 = vpack.c.b16 %v869, %v865
        %v978 = vpack.c.b16 %v870, %v866
        %v979 = vpack.c.b16 %v875, %v871
        %v980 = vpack.c.b16 %v876, %v872
        %v981 = vpack.c.b16 %v877, %v873
        %v982 = vpack.c.b16 %v878, %v874
        %v983 = vpack.c.b16 %v883, %v879
        %v984 = vpack.c.b16 %v884, %v880
        %v985 = vpack.c.b16 %v885, %v881
        %v986 = vpack.c.b16 %v886, %v882
        %v987 = vpack.c.b16 %v891, %v887
        %v988 = vpack.c.b16 %v892, %v888
        %v989 = vpack.c.b16 %v893, %v889
        %v990 = vpack.c.b16 %v894, %v890
        %v991 = vpack.c.b16 %v899, %v895
        %v992 = vpack.c.b16 %v900, %v896
        %v993 = vpack.c.b16 %v901, %v897
        %v994 = vpack.c.b16 %v902, %v898
        %v995 = vpack.c.b16 %v907, %v903
        %v996 = vpack.c.b16 %v908, %v904
        %v997 = vpack.c.b16 %v909, %v905
        %v998 = vpack.c.b16 %v910, %v906
        %v999 = vpack.c.b16 %v915, %v911
        %v1000 = vpack.c.b16 %v916, %v912
        %v1001 = vpack.c.b16 %v917, %v913
        %v1002 = vpack.c.b16 %v918, %v914
        %v1003 = vpack.c.b16 %v923, %v919
        %v1004 = vpack.c.b16 %v924, %v920
        %v1005 = vpack.c.b16 %v925, %v921
        %v1006 = vpack.c.b16 %v926, %v922
        %v1007 = vpack.c.b16 %v931, %v927
        %v1008 = vpack.c.b16 %v932, %v928
        %v1009 = vpack.c.b16 %v933, %v929
        %v1010 = vpack.c.b16 %v934, %v930
        %v1011 = vpack.c.b16 %v939, %v935
        %v1012 = vpack.c.b16 %v940, %v936
        %v1013 = vpack.c.b16 %v941, %v937
        %v1014 = vpack.c.b16 %v942, %v938
        %v1015 = vpack.c.b16 %v947, %v943
        %v1016 = vpack.c.b16 %v948, %v944
        %v1017 = vpack.c.b16 %v949, %v945
        %v1018 = vpack.c.b16 %v950, %v946
        %v1019 = vpack.c.b16 %v955, %v951
        %v1020 = vpack.c.b16 %v956, %v952
        %v1021 = vpack.c.b16 %v957, %v953
        %v1022 = vpack.c.b16 %v958, %v954
        %1087 = vmatprep.subr.bf16.mxu0 %v960
        %1088 = vmatpush1.bf16.msra.mxu0 %v959
        %1089 = vmatprep.subr.bf16.mxu0 %v964
        %1090 = vmatpush1.bf16.msra.mxu0 %v963
        %1091 = vmatprep.subr.bf16.mxu0 %v968
        %1092 = vmatpush1.bf16.msra.mxu0 %v967
        %1093 = vmatprep.subr.bf16.mxu0 %v972
        %1094 = vmatpush1.bf16.msra.mxu0 %v971
        %1095 = vmatprep.subr.bf16.mxu0 %v976
        %1096 = vmatpush1.bf16.msra.mxu0 %v975
        %1097 = vmatprep.subr.bf16.mxu0 %v980
        %1098 = vmatpush1.bf16.msra.mxu0 %v979
        %1099 = vmatprep.subr.bf16.mxu0 %v984
        %1100 = vmatpush1.bf16.msra.mxu0 %v983
        %1101 = vmatprep.subr.bf16.mxu0 %v988
        %1102 = vmatpush1.bf16.msra.mxu0 %v987
        %1103 = vmatprep.subr.bf16.mxu0 %v992
        %1104 = vmatpush1.bf16.msra.mxu0 %v991
        %1105 = vmatprep.subr.bf16.mxu0 %v996
        %1106 = vmatpush1.bf16.msra.mxu0 %v995
        %1107 = vmatprep.subr.bf16.mxu0 %v1000
        %1108 = vmatpush1.bf16.msra.mxu0 %v999
        %1109 = vmatprep.subr.bf16.mxu0 %v1004
        %1110 = vmatpush1.bf16.msra.mxu0 %v1003
        %1111 = vmatprep.subr.bf16.mxu0 %v1008
        %1112 = vmatpush1.bf16.msra.mxu0 %v1007
        %1113 = vmatprep.subr.bf16.mxu0 %v1012
        %1114 = vmatpush1.bf16.msra.mxu0 %v1011
        %1115 = vmatprep.subr.bf16.mxu0 %v1016
        %1116 = vmatpush1.bf16.msra.mxu0 %v1015
        %1117 = vmatprep.subr.bf16.mxu0 %v1020
        %1118 = vmatpush1.bf16.msra.mxu0 %v1019
        %1119 = vmatprep.mubr.bf16.mxu0 %v704
        %1120 = vmatmul.mubr.bf16.gmra.mrb[0].mxu0 %v703
        %v1121 = vpop.f32.mrb[0].mxu0
        %v1122 = vadd.f32 0.0, %v1121
        %v1123 = vpop.f32.mrb[0].mxu0
        %v1124 = vadd.f32 0.0, %v1123
        %v1125 = vpop.f32.mrb[0].mxu0
        %v1126 = vadd.f32 0.0, %v1125
        %v1127 = vpop.f32.mrb[0].mxu0
        %v1128 = vadd.f32 0.0, %v1127
        %1129 = vmatprep.mubr.bf16.mxu0 %v706
        %1130 = vmatmul.mubr.bf16.gmra.mrb[0].mxu0 %v705
        %v1131 = vpop.f32.mrb[0].mxu0
        %v1132 = vadd.f32 0.0, %v1131
        %v1133 = vpop.f32.mrb[0].mxu0
        %v1134 = vadd.f32 0.0, %v1133
        %v1135 = vpop.f32.mrb[0].mxu0
        %v1136 = vadd.f32 0.0, %v1135
        %v1137 = vpop.f32.mrb[0].mxu0
        %v1138 = vadd.f32 0.0, %v1137
        %1139 = vmatprep.mubr.bf16.mxu0 %v708
        %1140 = vmatmul.mubr.bf16.gmra.mrb[0].mxu0 %v707
        %v1141 = vpop.f32.mrb[0].mxu0
        %v1142 = vadd.f32 0.0, %v1141
        %v1143 = vpop.f32.mrb[0].mxu0
        %v1144 = vadd.f32 0.0, %v1143
        %v1145 = vpop.f32.mrb[0].mxu0
        %v1146 = vadd.f32 0.0, %v1145
        %v1147 = vpop.f32.mrb[0].mxu0
        %v1148 = vadd.f32 0.0, %v1147
        %1149 = vmatprep.mubr.bf16.mxu0 %v710
        %1150 = vmatmul.mubr.bf16.gmra.mrb[0].mxu0 %v709
        %v1151 = vpop.f32.mrb[0].mxu0
        %v1152 = vadd.f32 0.0, %v1151
        %v1153 = vpop.f32.mrb[0].mxu0
        %v1154 = vadd.f32 0.0, %v1153
        %v1155 = vpop.f32.mrb[0].mxu0
        %v1156 = vadd.f32 0.0, %v1155
        %v1157 = vpop.f32.mrb[0].mxu0
        %v1158 = vadd.f32 0.0, %v1157
        %1159 = vmatprep.mubr.bf16.mxu0 %v712
        %1160 = vmatmul.mubr.bf16.gmra.mrb[0].mxu0 %v711
        %v1161 = vpop.f32.mrb[0].mxu0
        %v1162 = vadd.f32 0.0, %v1161
        %v1163 = vpop.f32.mrb[0].mxu0
        %v1164 = vadd.f32 0.0, %v1163
        %v1165 = vpop.f32.mrb[0].mxu0
        %v1166 = vadd.f32 0.0, %v1165
        %v1167 = vpop.f32.mrb[0].mxu0
        %v1168 = vadd.f32 0.0, %v1167
        %1169 = vmatprep.mubr.bf16.mxu0 %v714
        %1170 = vmatmul.mubr.bf16.gmra.mrb[0].mxu0 %v713
        %v1171 = vpop.f32.mrb[0].mxu0
        %v1172 = vadd.f32 0.0, %v1171
        %v1173 = vpop.f32.mrb[0].mxu0
        %v1174 = vadd.f32 0.0, %v1173
        %v1175 = vpop.f32.mrb[0].mxu0
        %v1176 = vadd.f32 0.0, %v1175
        %v1177 = vpop.f32.mrb[0].mxu0
        %v1178 = vadd.f32 0.0, %v1177
        %1179 = vmatprep.mubr.bf16.mxu0 %v716
        %1180 = vmatmul.mubr.bf16.gmra.mrb[0].mxu0 %v715
        %v1181 = vpop.f32.mrb[0].mxu0
        %v1182 = vadd.f32 0.0, %v1181
        %v1183 = vpop.f32.mrb[0].mxu0
        %v1184 = vadd.f32 0.0, %v1183
        %v1185 = vpop.f32.mrb[0].mxu0
        %v1186 = vadd.f32 0.0, %v1185
        %v1187 = vpop.f32.mrb[0].mxu0
        %v1188 = vadd.f32 0.0, %v1187
        %1189 = vmatprep.mubr.bf16.mxu0 %v718
        %1190 = vmatmul.mubr.bf16.gmra.mrb[0].mxu0 %v717
        %v1191 = vpop.f32.mrb[0].mxu0
        %v1192 = vadd.f32 0.0, %v1191
        %v1193 = vpop.f32.mrb[0].mxu0
        %v1194 = vadd.f32 0.0, %v1193
        %v1195 = vpop.f32.mrb[0].mxu0
        %v1196 = vadd.f32 0.0, %v1195
        %v1197 = vpop.f32.mrb[0].mxu0
        %v1198 = vadd.f32 0.0, %v1197
        %1199 = vmatprep.mubr.bf16.mxu0 %v720
        %1200 = vmatmul.mubr.bf16.gmra.mrb[0].mxu0 %v719
        %v1201 = vpop.f32.mrb[0].mxu0
        %v1202 = vadd.f32 0.0, %v1201
        %v1203 = vpop.f32.mrb[0].mxu0
        %v1204 = vadd.f32 0.0, %v1203
        %v1205 = vpop.f32.mrb[0].mxu0
        %v1206 = vadd.f32 0.0, %v1205
        %v1207 = vpop.f32.mrb[0].mxu0
        %v1208 = vadd.f32 0.0, %v1207
        %1209 = vmatprep.mubr.bf16.mxu0 %v722
        %1210 = vmatmul.mubr.bf16.gmra.mrb[0].mxu0 %v721
        %v1211 = vpop.f32.mrb[0].mxu0
        %v1212 = vadd.f32 0.0, %v1211
        %v1213 = vpop.f32.mrb[0].mxu0
        %v1214 = vadd.f32 0.0, %v1213
        %v1215 = vpop.f32.mrb[0].mxu0
        %v1216 = vadd.f32 0.0, %v1215
        %v1217 = vpop.f32.mrb[0].mxu0
        %v1218 = vadd.f32 0.0, %v1217
        %1219 = vmatprep.mubr.bf16.mxu0 %v724
        %1220 = vmatmul.mubr.bf16.gmra.mrb[0].mxu0 %v723
        %v1221 = vpop.f32.mrb[0].mxu0
        %v1222 = vadd.f32 0.0, %v1221
        %v1223 = vpop.f32.mrb[0].mxu0
        %v1224 = vadd.f32 0.0, %v1223
        %v1225 = vpop.f32.mrb[0].mxu0
        %v1226 = vadd.f32 0.0, %v1225
        %v1227 = vpop.f32.mrb[0].mxu0
        %v1228 = vadd.f32 0.0, %v1227
        %1229 = vmatprep.mubr.bf16.mxu0 %v726
        %1230 = vmatmul.mubr.bf16.gmra.mrb[0].mxu0 %v725
        %v1231 = vpop.f32.mrb[0].mxu0
        %v1232 = vadd.f32 0.0, %v1231
        %v1233 = vpop.f32.mrb[0].mxu0
        %v1234 = vadd.f32 0.0, %v1233
        %v1235 = vpop.f32.mrb[0].mxu0
        %v1236 = vadd.f32 0.0, %v1235
        %v1237 = vpop.f32.mrb[0].mxu0
        %v1238 = vadd.f32 0.0, %v1237
        %1239 = vmatprep.mubr.bf16.mxu0 %v728
        %1240 = vmatmul.mubr.bf16.gmra.mrb[0].mxu0 %v727
        %v1241 = vpop.f32.mrb[0].mxu0
        %v1242 = vadd.f32 0.0, %v1241
        %v1243 = vpop.f32.mrb[0].mxu0
        %v1244 = vadd.f32 0.0, %v1243
        %v1245 = vpop.f32.mrb[0].mxu0
        %v1246 = vadd.f32 0.0, %v1245
        %v1247 = vpop.f32.mrb[0].mxu0
        %v1248 = vadd.f32 0.0, %v1247
        %1249 = vmatprep.mubr.bf16.mxu0 %v730
        %1250 = vmatmul.mubr.bf16.gmra.mrb[0].mxu0 %v729
        %v1251 = vpop.f32.mrb[0].mxu0
        %v1252 = vadd.f32 0.0, %v1251
        %v1253 = vpop.f32.mrb[0].mxu0
        %v1254 = vadd.f32 0.0, %v1253
        %v1255 = vpop.f32.mrb[0].mxu0
        %v1256 = vadd.f32 0.0, %v1255
        %v1257 = vpop.f32.mrb[0].mxu0
        %v1258 = vadd.f32 0.0, %v1257
        %1259 = vmatprep.mubr.bf16.mxu0 %v732
        %1260 = vmatmul.mubr.bf16.gmra.mrb[0].mxu0 %v731
        %v1261 = vpop.f32.mrb[0].mxu0
        %v1262 = vadd.f32 0.0, %v1261
        %v1263 = vpop.f32.mrb[0].mxu0
        %v1264 = vadd.f32 0.0, %v1263
        %v1265 = vpop.f32.mrb[0].mxu0
        %v1266 = vadd.f32 0.0, %v1265
        %v1267 = vpop.f32.mrb[0].mxu0
        %v1268 = vadd.f32 0.0, %v1267
        %1269 = vmatprep.mubr.bf16.mxu0 %v734
        %1270 = vmatmul.mubr.bf16.gmra.mrb[0].mxu0 %v733
        %v1271 = vpop.f32.mrb[0].mxu0
        %v1272 = vadd.f32 0.0, %v1271
        %v1273 = vpop.f32.mrb[0].mxu0
        %v1274 = vadd.f32 0.0, %v1273
        %v1275 = vpop.f32.mrb[0].mxu0
        %v1276 = vadd.f32 0.0, %v1275
        %v1277 = vpop.f32.mrb[0].mxu0
        %v1278 = vadd.f32 0.0, %v1277
        %1279 = vdwg.mxu0
        %1280 = vmatprep.subr.bf16.mxu0 %v962
        %1281 = vmatpush1.bf16.msra.mxu0 %v961
        %1282 = vmatprep.subr.bf16.mxu0 %v966
        %1283 = vmatpush1.bf16.msra.mxu0 %v965
        %1284 = vmatprep.subr.bf16.mxu0 %v970
        %1285 = vmatpush1.bf16.msra.mxu0 %v969
        %1286 = vmatprep.subr.bf16.mxu0 %v974
        %1287 = vmatpush1.bf16.msra.mxu0 %v973
        %1288 = vmatprep.subr.bf16.mxu0 %v978
        %1289 = vmatpush1.bf16.msra.mxu0 %v977
        %1290 = vmatprep.subr.bf16.mxu0 %v982
        %1291 = vmatpush1.bf16.msra.mxu0 %v981
        %1292 = vmatprep.subr.bf16.mxu0 %v986
        %1293 = vmatpush1.bf16.msra.mxu0 %v985
        %1294 = vmatprep.subr.bf16.mxu0 %v990
        %1295 = vmatpush1.bf16.msra.mxu0 %v989
        %1296 = vmatprep.subr.bf16.mxu0 %v994
        %1297 = vmatpush1.bf16.msra.mxu0 %v993
        %1298 = vmatprep.subr.bf16.mxu0 %v998
        %1299 = vmatpush1.bf16.msra.mxu0 %v997
        %1300 = vmatprep.subr.bf16.mxu0 %v1002
        %1301 = vmatpush1.bf16.msra.mxu0 %v1001
        %1302 = vmatprep.subr.bf16.mxu0 %v1006
        %1303 = vmatpush1.bf16.msra.mxu0 %v1005
        %1304 = vmatprep.subr.bf16.mxu0 %v1010
        %1305 = vmatpush1.bf16.msra.mxu0 %v1009
        %1306 = vmatprep.subr.bf16.mxu0 %v1014
        %1307 = vmatpush1.bf16.msra.mxu0 %v1013
        %1308 = vmatprep.subr.bf16.mxu0 %v1018
        %1309 = vmatpush1.bf16.msra.mxu0 %v1017
        %1310 = vmatprep.subr.bf16.mxu0 %v1022
        %1311 = vmatpush1.bf16.msra.mxu0 %v1021
        %1312 = vmatprep.mubr.bf16.mxu0 %v704
        %1313 = vmatmul.mubr.bf16.gmra.mrb[0].mxu0 %v703
        %v1314 = vpop.f32.mrb[0].mxu0
        %v1315 = vadd.f32 0.0, %v1314
        %v1316 = vpop.f32.mrb[0].mxu0
        %v1317 = vadd.f32 0.0, %v1316
        %v1318 = vpop.f32.mrb[0].mxu0
        %v1319 = vadd.f32 0.0, %v1318
        %v1320 = vpop.f32.mrb[0].mxu0
        %v1321 = vadd.f32 0.0, %v1320
        %1322 = vmatprep.mubr.bf16.mxu0 %v706
        %1323 = vmatmul.mubr.bf16.gmra.mrb[0].mxu0 %v705
        %v1324 = vpop.f32.mrb[0].mxu0
        %v1325 = vadd.f32 0.0, %v1324
        %v1326 = vpop.f32.mrb[0].mxu0
        %v1327 = vadd.f32 0.0, %v1326
        %v1328 = vpop.f32.mrb[0].mxu0
        %v1329 = vadd.f32 0.0, %v1328
        %v1330 = vpop.f32.mrb[0].mxu0
        %v1331 = vadd.f32 0.0, %v1330
        %1332 = vmatprep.mubr.bf16.mxu0 %v708
        %1333 = vmatmul.mubr.bf16.gmra.mrb[0].mxu0 %v707
        %v1334 = vpop.f32.mrb[0].mxu0
        %v1335 = vadd.f32 0.0, %v1334
        %v1336 = vpop.f32.mrb[0].mxu0
        %v1337 = vadd.f32 0.0, %v1336
        %v1338 = vpop.f32.mrb[0].mxu0
        %v1339 = vadd.f32 0.0, %v1338
        %v1340 = vpop.f32.mrb[0].mxu0
        %v1341 = vadd.f32 0.0, %v1340
        %1342 = vmatprep.mubr.bf16.mxu0 %v710
        %1343 = vmatmul.mubr.bf16.gmra.mrb[0].mxu0 %v709
        %v1344 = vpop.f32.mrb[0].mxu0
        %v1345 = vadd.f32 0.0, %v1344
        %v1346 = vpop.f32.mrb[0].mxu0
        %v1347 = vadd.f32 0.0, %v1346
        %v1348 = vpop.f32.mrb[0].mxu0
        %v1349 = vadd.f32 0.0, %v1348
        %v1350 = vpop.f32.mrb[0].mxu0
        %v1351 = vadd.f32 0.0, %v1350
        %1352 = vmatprep.mubr.bf16.mxu0 %v712
        %1353 = vmatmul.mubr.bf16.gmra.mrb[0].mxu0 %v711
        %v1354 = vpop.f32.mrb[0].mxu0
        %v1355 = vadd.f32 0.0, %v1354
        %v1356 = vpop.f32.mrb[0].mxu0
        %v1357 = vadd.f32 0.0, %v1356
        %v1358 = vpop.f32.mrb[0].mxu0
        %v1359 = vadd.f32 0.0, %v1358
        %v1360 = vpop.f32.mrb[0].mxu0
        %v1361 = vadd.f32 0.0, %v1360
        %1362 = vmatprep.mubr.bf16.mxu0 %v714
        %1363 = vmatmul.mubr.bf16.gmra.mrb[0].mxu0 %v713
        %v1364 = vpop.f32.mrb[0].mxu0
        %v1365 = vadd.f32 0.0, %v1364
        %v1366 = vpop.f32.mrb[0].mxu0
        %v1367 = vadd.f32 0.0, %v1366
        %v1368 = vpop.f32.mrb[0].mxu0
        %v1369 = vadd.f32 0.0, %v1368
        %v1370 = vpop.f32.mrb[0].mxu0
        %v1371 = vadd.f32 0.0, %v1370
        %1372 = vmatprep.mubr.bf16.mxu0 %v716
        %1373 = vmatmul.mubr.bf16.gmra.mrb[0].mxu0 %v715
        %v1374 = vpop.f32.mrb[0].mxu0
        %v1375 = vadd.f32 0.0, %v1374
        %v1376 = vpop.f32.mrb[0].mxu0
        %v1377 = vadd.f32 0.0, %v1376
        %v1378 = vpop.f32.mrb[0].mxu0
        %v1379 = vadd.f32 0.0, %v1378
        %v1380 = vpop.f32.mrb[0].mxu0
        %v1381 = vadd.f32 0.0, %v1380
        %1382 = vmatprep.mubr.bf16.mxu0 %v718
        %1383 = vmatmul.mubr.bf16.gmra.mrb[0].mxu0 %v717
        %v1384 = vpop.f32.mrb[0].mxu0
        %v1385 = vadd.f32 0.0, %v1384
        %v1386 = vpop.f32.mrb[0].mxu0
        %v1387 = vadd.f32 0.0, %v1386
        %v1388 = vpop.f32.mrb[0].mxu0
        %v1389 = vadd.f32 0.0, %v1388
        %v1390 = vpop.f32.mrb[0].mxu0
        %v1391 = vadd.f32 0.0, %v1390
        %1392 = vmatprep.mubr.bf16.mxu0 %v720
        %1393 = vmatmul.mubr.bf16.gmra.mrb[0].mxu0 %v719
        %v1394 = vpop.f32.mrb[0].mxu0
        %v1395 = vadd.f32 0.0, %v1394
        %v1396 = vpop.f32.mrb[0].mxu0
        %v1397 = vadd.f32 0.0, %v1396
        %v1398 = vpop.f32.mrb[0].mxu0
        %v1399 = vadd.f32 0.0, %v1398
        %v1400 = vpop.f32.mrb[0].mxu0
        %v1401 = vadd.f32 0.0, %v1400
        %1402 = vmatprep.mubr.bf16.mxu0 %v722
        %1403 = vmatmul.mubr.bf16.gmra.mrb[0].mxu0 %v721
        %v1404 = vpop.f32.mrb[0].mxu0
        %v1405 = vadd.f32 0.0, %v1404
        %v1406 = vpop.f32.mrb[0].mxu0
        %v1407 = vadd.f32 0.0, %v1406
        %v1408 = vpop.f32.mrb[0].mxu0
        %v1409 = vadd.f32 0.0, %v1408
        %v1410 = vpop.f32.mrb[0].mxu0
        %v1411 = vadd.f32 0.0, %v1410
        %1412 = vmatprep.mubr.bf16.mxu0 %v724
        %1413 = vmatmul.mubr.bf16.gmra.mrb[0].mxu0 %v723
        %v1414 = vpop.f32.mrb[0].mxu0
        %v1415 = vadd.f32 0.0, %v1414
        %v1416 = vpop.f32.mrb[0].mxu0
        %v1417 = vadd.f32 0.0, %v1416
        %v1418 = vpop.f32.mrb[0].mxu0
        %v1419 = vadd.f32 0.0, %v1418
        %v1420 = vpop.f32.mrb[0].mxu0
        %v1421 = vadd.f32 0.0, %v1420
        %1422 = vmatprep.mubr.bf16.mxu0 %v726
        %1423 = vmatmul.mubr.bf16.gmra.mrb[0].mxu0 %v725
        %v1424 = vpop.f32.mrb[0].mxu0
        %v1425 = vadd.f32 0.0, %v1424
        %v1426 = vpop.f32.mrb[0].mxu0
        %v1427 = vadd.f32 0.0, %v1426
        %v1428 = vpop.f32.mrb[0].mxu0
        %v1429 = vadd.f32 0.0, %v1428
        %v1430 = vpop.f32.mrb[0].mxu0
        %v1431 = vadd.f32 0.0, %v1430
        %1432 = vmatprep.mubr.bf16.mxu0 %v728
        %1433 = vmatmul.mubr.bf16.gmra.mrb[0].mxu0 %v727
        %v1434 = vpop.f32.mrb[0].mxu0
        %v1435 = vadd.f32 0.0, %v1434
        %v1436 = vpop.f32.mrb[0].mxu0
        %v1437 = vadd.f32 0.0, %v1436
        %v1438 = vpop.f32.mrb[0].mxu0
        %v1439 = vadd.f32 0.0, %v1438
        %v1440 = vpop.f32.mrb[0].mxu0
        %v1441 = vadd.f32 0.0, %v1440
        %1442 = vmatprep.mubr.bf16.mxu0 %v730
        %1443 = vmatmul.mubr.bf16.gmra.mrb[0].mxu0 %v729
        %v1444 = vpop.f32.mrb[0].mxu0
        %v1445 = vadd.f32 0.0, %v1444
        %v1446 = vpop.f32.mrb[0].mxu0
        %v1447 = vadd.f32 0.0, %v1446
        %v1448 = vpop.f32.mrb[0].mxu0
        %v1449 = vadd.f32 0.0, %v1448
        %v1450 = vpop.f32.mrb[0].mxu0
        %v1451 = vadd.f32 0.0, %v1450
        %1452 = vmatprep.mubr.bf16.mxu0 %v732
        %1453 = vmatmul.mubr.bf16.gmra.mrb[0].mxu0 %v731
        %v1454 = vpop.f32.mrb[0].mxu0
        %v1455 = vadd.f32 0.0, %v1454
        %v1456 = vpop.f32.mrb[0].mxu0
        %v1457 = vadd.f32 0.0, %v1456
        %v1458 = vpop.f32.mrb[0].mxu0
        %v1459 = vadd.f32 0.0, %v1458
        %v1460 = vpop.f32.mrb[0].mxu0
        %v1461 = vadd.f32 0.0, %v1460
        %1462 = vmatprep.mubr.bf16.mxu0 %v734
        %1463 = vmatmul.mubr.bf16.gmra.mrb[0].mxu0 %v733
        %v1464 = vpop.f32.mrb[0].mxu0
        %v1465 = vadd.f32 0.0, %v1464
        %v1466 = vpop.f32.mrb[0].mxu0
        %v1467 = vadd.f32 0.0, %v1466
        %v1468 = vpop.f32.mrb[0].mxu0
        %v1469 = vadd.f32 0.0, %v1468
        %v1470 = vpop.f32.mrb[0].mxu0
        %v1471 = vadd.f32 0.0, %v1470
        %1472 = vdwg.mxu0
        %v1473 = vxor.u32 %v1122, 2147483648
        %v1474 = vxor.u32 %v1124, 2147483648
        %v1475 = vxor.u32 %v1126, 2147483648
        %v1476 = vxor.u32 %v1128, 2147483648
        %v1477 = vxor.u32 %v1132, 2147483648
        %v1478 = vxor.u32 %v1134, 2147483648
        %v1479 = vxor.u32 %v1136, 2147483648
        %v1480 = vxor.u32 %v1138, 2147483648
        %v1481 = vxor.u32 %v1142, 2147483648
        %v1482 = vxor.u32 %v1144, 2147483648
        %v1483 = vxor.u32 %v1146, 2147483648
        %v1484 = vxor.u32 %v1148, 2147483648
        %v1485 = vxor.u32 %v1152, 2147483648
        %v1486 = vxor.u32 %v1154, 2147483648
        %v1487 = vxor.u32 %v1156, 2147483648
        %v1488 = vxor.u32 %v1158, 2147483648
        %v1489 = vxor.u32 %v1162, 2147483648
        %v1490 = vxor.u32 %v1164, 2147483648
        %v1491 = vxor.u32 %v1166, 2147483648
        %v1492 = vxor.u32 %v1168, 2147483648
        %v1493 = vxor.u32 %v1172, 2147483648
        %v1494 = vxor.u32 %v1174, 2147483648
        %v1495 = vxor.u32 %v1176, 2147483648
        %v1496 = vxor.u32 %v1178, 2147483648
        %v1497 = vxor.u32 %v1182, 2147483648
        %v1498 = vxor.u32 %v1184, 2147483648
        %v1499 = vxor.u32 %v1186, 2147483648
        %v1500 = vxor.u32 %v1188, 2147483648
        %v1501 = vxor.u32 %v1192, 2147483648
        %v1502 = vxor.u32 %v1194, 2147483648
        %v1503 = vxor.u32 %v1196, 2147483648
        %v1504 = vxor.u32 %v1198, 2147483648
        %v1505 = vxor.u32 %v1202, 2147483648
        %v1506 = vxor.u32 %v1204, 2147483648
        %v1507 = vxor.u32 %v1206, 2147483648
        %v1508 = vxor.u32 %v1208, 2147483648
        %v1509 = vxor.u32 %v1212, 2147483648
        %v1510 = vxor.u32 %v1214, 2147483648
        %v1511 = vxor.u32 %v1216, 2147483648
        %v1512 = vxor.u32 %v1218, 2147483648
        %v1513 = vxor.u32 %v1222, 2147483648
        %v1514 = vxor.u32 %v1224, 2147483648
        %v1515 = vxor.u32 %v1226, 2147483648
        %v1516 = vxor.u32 %v1228, 2147483648
        %v1517 = vxor.u32 %v1232, 2147483648
        %v1518 = vxor.u32 %v1234, 2147483648
        %v1519 = vxor.u32 %v1236, 2147483648
        %v1520 = vxor.u32 %v1238, 2147483648
        %v1521 = vxor.u32 %v1242, 2147483648
        %v1522 = vxor.u32 %v1244, 2147483648
        %v1523 = vxor.u32 %v1246, 2147483648
        %v1524 = vxor.u32 %v1248, 2147483648
        %v1525 = vxor.u32 %v1252, 2147483648
        %v1526 = vxor.u32 %v1254, 2147483648
        %v1527 = vxor.u32 %v1256, 2147483648
        %v1528 = vxor.u32 %v1258, 2147483648
        %v1529 = vxor.u32 %v1262, 2147483648
        %v1530 = vxor.u32 %v1264, 2147483648
        %v1531 = vxor.u32 %v1266, 2147483648
        %v1532 = vxor.u32 %v1268, 2147483648
        %v1533 = vxor.u32 %v1272, 2147483648
        %v1534 = vxor.u32 %v1274, 2147483648
        %v1535 = vxor.u32 %v1276, 2147483648
        %v1536 = vxor.u32 %v1278, 2147483648
        %v1537 = vmul.f32 %v1473, 1.442695
        %v1538 = vpow.pop %v1537
        %v1539 = vmul.f32 %v1474, 1.442695
        %v1540 = vpow.pop %v1539
        %v1541 = vmul.f32 %v1475, 1.442695
        %v1542 = vpow.pop %v1541
        %v1543 = vmul.f32 %v1476, 1.442695
        %v1544 = vpow.pop %v1543
        %v1545 = vmul.f32 %v1477, 1.442695
        %v1546 = vpow.pop %v1545
        %v1547 = vmul.f32 %v1478, 1.442695
        %v1548 = vpow.pop %v1547
        %v1549 = vmul.f32 %v1479, 1.442695
        %v1550 = vpow.pop %v1549
        %v1551 = vmul.f32 %v1480, 1.442695
        %v1552 = vpow.pop %v1551
        %v1553 = vmul.f32 %v1481, 1.442695
        %v1554 = vpow.pop %v1553
        %v1555 = vmul.f32 %v1482, 1.442695
        %v1556 = vpow.pop %v1555
        %v1557 = vmul.f32 %v1483, 1.442695
        %v1558 = vpow.pop %v1557
        %v1559 = vmul.f32 %v1484, 1.442695
        %v1560 = vpow.pop %v1559
        %v1561 = vmul.f32 %v1485, 1.442695
        %v1562 = vpow.pop %v1561
        %v1563 = vmul.f32 %v1486, 1.442695
        %v1564 = vpow.pop %v1563
        %v1565 = vmul.f32 %v1487, 1.442695
        %v1566 = vpow.pop %v1565
        %v1567 = vmul.f32 %v1488, 1.442695
        %v1568 = vpow.pop %v1567
        %v1569 = vmul.f32 %v1489, 1.442695
        %v1570 = vpow.pop %v1569
        %v1571 = vmul.f32 %v1490, 1.442695
        %v1572 = vpow.pop %v1571
        %v1573 = vmul.f32 %v1491, 1.442695
        %v1574 = vpow.pop %v1573
        %v1575 = vmul.f32 %v1492, 1.442695
        %v1576 = vpow.pop %v1575
        %v1577 = vmul.f32 %v1493, 1.442695
        %v1578 = vpow.pop %v1577
        %v1579 = vmul.f32 %v1494, 1.442695
        %v1580 = vpow.pop %v1579
        %v1581 = vmul.f32 %v1495, 1.442695
        %v1582 = vpow.pop %v1581
        %v1583 = vmul.f32 %v1496, 1.442695
        %v1584 = vpow.pop %v1583
        %v1585 = vmul.f32 %v1497, 1.442695
        %v1586 = vpow.pop %v1585
        %v1587 = vmul.f32 %v1498, 1.442695
        %v1588 = vpow.pop %v1587
        %v1589 = vmul.f32 %v1499, 1.442695
        %v1590 = vpow.pop %v1589
        %v1591 = vmul.f32 %v1500, 1.442695
        %v1592 = vpow.pop %v1591
        %v1593 = vmul.f32 %v1501, 1.442695
        %v1594 = vpow.pop %v1593
        %v1595 = vmul.f32 %v1502, 1.442695
        %v1596 = vpow.pop %v1595
        %v1597 = vmul.f32 %v1503, 1.442695
        %v1598 = vpow.pop %v1597
        %v1599 = vmul.f32 %v1504, 1.442695
        %v1600 = vpow.pop %v1599
        %v1601 = vmul.f32 %v1505, 1.442695
        %v1602 = vpow.pop %v1601
        %v1603 = vmul.f32 %v1506, 1.442695
        %v1604 = vpow.pop %v1603
        %v1605 = vmul.f32 %v1507, 1.442695
        %v1606 = vpow.pop %v1605
        %v1607 = vmul.f32 %v1508, 1.442695
        %v1608 = vpow.pop %v1607
        %v1609 = vmul.f32 %v1509, 1.442695
        %v1610 = vpow.pop %v1609
        %v1611 = vmul.f32 %v1510, 1.442695
        %v1612 = vpow.pop %v1611
        %v1613 = vmul.f32 %v1511, 1.442695
        %v1614 = vpow.pop %v1613
        %v1615 = vmul.f32 %v1512, 1.442695
        %v1616 = vpow.pop %v1615
        %v1617 = vmul.f32 %v1513, 1.442695
        %v1618 = vpow.pop %v1617
        %v1619 = vmul.f32 %v1514, 1.442695
        %v1620 = vpow.pop %v1619
        %v1621 = vmul.f32 %v1515, 1.442695
        %v1622 = vpow.pop %v1621
        %v1623 = vmul.f32 %v1516, 1.442695
        %v1624 = vpow.pop %v1623
        %v1625 = vmul.f32 %v1517, 1.442695
        %v1626 = vpow.pop %v1625
        %v1627 = vmul.f32 %v1518, 1.442695
        %v1628 = vpow.pop %v1627
        %v1629 = vmul.f32 %v1519, 1.442695
        %v1630 = vpow.pop %v1629
        %v1631 = vmul.f32 %v1520, 1.442695
        %v1632 = vpow.pop %v1631
        %v1633 = vmul.f32 %v1521, 1.442695
        %v1634 = vpow.pop %v1633
        %v1635 = vmul.f32 %v1522, 1.442695
        %v1636 = vpow.pop %v1635
        %v1637 = vmul.f32 %v1523, 1.442695
        %v1638 = vpow.pop %v1637
        %v1639 = vmul.f32 %v1524, 1.442695
        %v1640 = vpow.pop %v1639
        %v1641 = vmul.f32 %v1525, 1.442695
        %v1642 = vpow.pop %v1641
        %v1643 = vmul.f32 %v1526, 1.442695
        %v1644 = vpow.pop %v1643
        %v1645 = vmul.f32 %v1527, 1.442695
        %v1646 = vpow.pop %v1645
        %v1647 = vmul.f32 %v1528, 1.442695
        %v1648 = vpow.pop %v1647
        %v1649 = vmul.f32 %v1529, 1.442695
        %v1650 = vpow.pop %v1649
        %v1651 = vmul.f32 %v1530, 1.442695
        %v1652 = vpow.pop %v1651
        %v1653 = vmul.f32 %v1531, 1.442695
        %v1654 = vpow.pop %v1653
        %v1655 = vmul.f32 %v1532, 1.442695
        %v1656 = vpow.pop %v1655
        %v1657 = vmul.f32 %v1533, 1.442695
        %v1658 = vpow.pop %v1657
        %v1659 = vmul.f32 %v1534, 1.442695
        %v1660 = vpow.pop %v1659
        %v1661 = vmul.f32 %v1535, 1.442695
        %v1662 = vpow.pop %v1661
        %v1663 = vmul.f32 %v1536, 1.442695
        %v1664 = vpow.pop %v1663
        %v1665 = vadd.f32 %v1538, 1.0
        %v1666 = vadd.f32 %v1540, 1.0
        %v1667 = vadd.f32 %v1542, 1.0
        %v1668 = vadd.f32 %v1544, 1.0
        %v1669 = vadd.f32 %v1546, 1.0
        %v1670 = vadd.f32 %v1548, 1.0
        %v1671 = vadd.f32 %v1550, 1.0
        %v1672 = vadd.f32 %v1552, 1.0
        %v1673 = vadd.f32 %v1554, 1.0
        %v1674 = vadd.f32 %v1556, 1.0
        %v1675 = vadd.f32 %v1558, 1.0
        %v1676 = vadd.f32 %v1560, 1.0
        %v1677 = vadd.f32 %v1562, 1.0
        %v1678 = vadd.f32 %v1564, 1.0
        %v1679 = vadd.f32 %v1566, 1.0
        %v1680 = vadd.f32 %v1568, 1.0
        %v1681 = vadd.f32 %v1570, 1.0
        %v1682 = vadd.f32 %v1572, 1.0
        %v1683 = vadd.f32 %v1574, 1.0
        %v1684 = vadd.f32 %v1576, 1.0
        %v1685 = vadd.f32 %v1578, 1.0
        %v1686 = vadd.f32 %v1580, 1.0
        %v1687 = vadd.f32 %v1582, 1.0
        %v1688 = vadd.f32 %v1584, 1.0
        %v1689 = vadd.f32 %v1586, 1.0
        %v1690 = vadd.f32 %v1588, 1.0
        %v1691 = vadd.f32 %v1590, 1.0
        %v1692 = vadd.f32 %v1592, 1.0
        %v1693 = vadd.f32 %v1594, 1.0
        %v1694 = vadd.f32 %v1596, 1.0
        %v1695 = vadd.f32 %v1598, 1.0
        %v1696 = vadd.f32 %v1600, 1.0
        %v1697 = vadd.f32 %v1602, 1.0
        %v1698 = vadd.f32 %v1604, 1.0
        %v1699 = vadd.f32 %v1606, 1.0
        %v1700 = vadd.f32 %v1608, 1.0
        %v1701 = vadd.f32 %v1610, 1.0
        %v1702 = vadd.f32 %v1612, 1.0
        %v1703 = vadd.f32 %v1614, 1.0
        %v1704 = vadd.f32 %v1616, 1.0
        %v1705 = vadd.f32 %v1618, 1.0
        %v1706 = vadd.f32 %v1620, 1.0
        %v1707 = vadd.f32 %v1622, 1.0
        %v1708 = vadd.f32 %v1624, 1.0
        %v1709 = vadd.f32 %v1626, 1.0
        %v1710 = vadd.f32 %v1628, 1.0
        %v1711 = vadd.f32 %v1630, 1.0
        %v1712 = vadd.f32 %v1632, 1.0
        %v1713 = vadd.f32 %v1634, 1.0
        %v1714 = vadd.f32 %v1636, 1.0
        %v1715 = vadd.f32 %v1638, 1.0
        %v1716 = vadd.f32 %v1640, 1.0
        %v1717 = vadd.f32 %v1642, 1.0
        %v1718 = vadd.f32 %v1644, 1.0
        %v1719 = vadd.f32 %v1646, 1.0
        %v1720 = vadd.f32 %v1648, 1.0
        %v1721 = vadd.f32 %v1650, 1.0
        %v1722 = vadd.f32 %v1652, 1.0
        %v1723 = vadd.f32 %v1654, 1.0
        %v1724 = vadd.f32 %v1656, 1.0
        %v1725 = vadd.f32 %v1658, 1.0
        %v1726 = vadd.f32 %v1660, 1.0
        %v1727 = vadd.f32 %v1662, 1.0
        %v1728 = vadd.f32 %v1664, 1.0
        %v1729 = vrcp.pop %v1665
        %v1730 = vmul.f32 1.0, %v1729
        %v1731 = vrcp.pop %v1666
        %v1732 = vmul.f32 1.0, %v1731
        %v1733 = vrcp.pop %v1667
        %v1734 = vmul.f32 1.0, %v1733
        %v1735 = vrcp.pop %v1668
        %v1736 = vmul.f32 1.0, %v1735
        %v1737 = vrcp.pop %v1669
        %v1738 = vmul.f32 1.0, %v1737
        %v1739 = vrcp.pop %v1670
        %v1740 = vmul.f32 1.0, %v1739
        %v1741 = vrcp.pop %v1671
        %v1742 = vmul.f32 1.0, %v1741
        %v1743 = vrcp.pop %v1672
        %v1744 = vmul.f32 1.0, %v1743
        %v1745 = vrcp.pop %v1673
        %v1746 = vmul.f32 1.0, %v1745
        %v1747 = vrcp.pop %v1674
        %v1748 = vmul.f32 1.0, %v1747
        %v1749 = vrcp.pop %v1675
        %v1750 = vmul.f32 1.0, %v1749
        %v1751 = vrcp.pop %v1676
        %v1752 = vmul.f32 1.0, %v1751
        %v1753 = vrcp.pop %v1677
        %v1754 = vmul.f32 1.0, %v1753
        %v1755 = vrcp.pop %v1678
        %v1756 = vmul.f32 1.0, %v1755
        %v1757 = vrcp.pop %v1679
        %v1758 = vmul.f32 1.0, %v1757
        %v1759 = vrcp.pop %v1680
        %v1760 = vmul.f32 1.0, %v1759
        %v1761 = vrcp.pop %v1681
        %v1762 = vmul.f32 1.0, %v1761
        %v1763 = vrcp.pop %v1682
        %v1764 = vmul.f32 1.0, %v1763
        %v1765 = vrcp.pop %v1683
        %v1766 = vmul.f32 1.0, %v1765
        %v1767 = vrcp.pop %v1684
        %v1768 = vmul.f32 1.0, %v1767
        %v1769 = vrcp.pop %v1685
        %v1770 = vmul.f32 1.0, %v1769
        %v1771 = vrcp.pop %v1686
        %v1772 = vmul.f32 1.0, %v1771
        %v1773 = vrcp.pop %v1687
        %v1774 = vmul.f32 1.0, %v1773
        %v1775 = vrcp.pop %v1688
        %v1776 = vmul.f32 1.0, %v1775
        %v1777 = vrcp.pop %v1689
        %v1778 = vmul.f32 1.0, %v1777
        %v1779 = vrcp.pop %v1690
        %v1780 = vmul.f32 1.0, %v1779
        %v1781 = vrcp.pop %v1691
        %v1782 = vmul.f32 1.0, %v1781
        %v1783 = vrcp.pop %v1692
        %v1784 = vmul.f32 1.0, %v1783
        %v1785 = vrcp.pop %v1693
        %v1786 = vmul.f32 1.0, %v1785
        %v1787 = vrcp.pop %v1694
        %v1788 = vmul.f32 1.0, %v1787
        %v1789 = vrcp.pop %v1695
        %v1790 = vmul.f32 1.0, %v1789
        %v1791 = vrcp.pop %v1696
        %v1792 = vmul.f32 1.0, %v1791
        %v1793 = vrcp.pop %v1697
        %v1794 = vmul.f32 1.0, %v1793
        %v1795 = vrcp.pop %v1698
        %v1796 = vmul.f32 1.0, %v1795
        %v1797 = vrcp.pop %v1699
        %v1798 = vmul.f32 1.0, %v1797
        %v1799 = vrcp.pop %v1700
        %v1800 = vmul.f32 1.0, %v1799
        %v1801 = vrcp.pop %v1701
        %v1802 = vmul.f32 1.0, %v1801
        %v1803 = vrcp.pop %v1702
        %v1804 = vmul.f32 1.0, %v1803
        %v1805 = vrcp.pop %v1703
        %v1806 = vmul.f32 1.0, %v1805
        %v1807 = vrcp.pop %v1704
        %v1808 = vmul.f32 1.0, %v1807
        %v1809 = vrcp.pop %v1705
        %v1810 = vmul.f32 1.0, %v1809
        %v1811 = vrcp.pop %v1706
        %v1812 = vmul.f32 1.0, %v1811
        %v1813 = vrcp.pop %v1707
        %v1814 = vmul.f32 1.0, %v1813
        %v1815 = vrcp.pop %v1708
        %v1816 = vmul.f32 1.0, %v1815
        %v1817 = vrcp.pop %v1709
        %v1818 = vmul.f32 1.0, %v1817
        %v1819 = vrcp.pop %v1710
        %v1820 = vmul.f32 1.0, %v1819
        %v1821 = vrcp.pop %v1711
        %v1822 = vmul.f32 1.0, %v1821
        %v1823 = vrcp.pop %v1712
        %v1824 = vmul.f32 1.0, %v1823
        %v1825 = vrcp.pop %v1713
        %v1826 = vmul.f32 1.0, %v1825
        %v1827 = vrcp.pop %v1714
        %v1828 = vmul.f32 1.0, %v1827
        %v1829 = vrcp.pop %v1715
        %v1830 = vmul.f32 1.0, %v1829
        %v1831 = vrcp.pop %v1716
        %v1832 = vmul.f32 1.0, %v1831
        %v1833 = vrcp.pop %v1717
        %v1834 = vmul.f32 1.0, %v1833
        %v1835 = vrcp.pop %v1718
        %v1836 = vmul.f32 1.0, %v1835
        %v1837 = vrcp.pop %v1719
        %v1838 = vmul.f32 1.0, %v1837
        %v1839 = vrcp.pop %v1720
        %v1840 = vmul.f32 1.0, %v1839
        %v1841 = vrcp.pop %v1721
        %v1842 = vmul.f32 1.0, %v1841
        %v1843 = vrcp.pop %v1722
        %v1844 = vmul.f32 1.0, %v1843
        %v1845 = vrcp.pop %v1723
        %v1846 = vmul.f32 1.0, %v1845
        %v1847 = vrcp.pop %v1724
        %v1848 = vmul.f32 1.0, %v1847
        %v1849 = vrcp.pop %v1725
        %v1850 = vmul.f32 1.0, %v1849
        %v1851 = vrcp.pop %v1726
        %v1852 = vmul.f32 1.0, %v1851
        %v1853 = vrcp.pop %v1727
        %v1854 = vmul.f32 1.0, %v1853
        %v1855 = vrcp.pop %v1728
        %v1856 = vmul.f32 1.0, %v1855
        %v1857 = vmul.f32 %v1122, %v1730
        %v1858 = vmul.f32 %v1124, %v1732
        %v1859 = vmul.f32 %v1126, %v1734
        %v1860 = vmul.f32 %v1128, %v1736
        %v1861 = vmul.f32 %v1132, %v1738
        %v1862 = vmul.f32 %v1134, %v1740
        %v1863 = vmul.f32 %v1136, %v1742
        %v1864 = vmul.f32 %v1138, %v1744
        %v1865 = vmul.f32 %v1142, %v1746
        %v1866 = vmul.f32 %v1144, %v1748
        %v1867 = vmul.f32 %v1146, %v1750
        %v1868 = vmul.f32 %v1148, %v1752
        %v1869 = vmul.f32 %v1152, %v1754
        %v1870 = vmul.f32 %v1154, %v1756
        %v1871 = vmul.f32 %v1156, %v1758
        %v1872 = vmul.f32 %v1158, %v1760
        %v1873 = vmul.f32 %v1162, %v1762
        %v1874 = vmul.f32 %v1164, %v1764
        %v1875 = vmul.f32 %v1166, %v1766
        %v1876 = vmul.f32 %v1168, %v1768
        %v1877 = vmul.f32 %v1172, %v1770
        %v1878 = vmul.f32 %v1174, %v1772
        %v1879 = vmul.f32 %v1176, %v1774
        %v1880 = vmul.f32 %v1178, %v1776
        %v1881 = vmul.f32 %v1182, %v1778
        %v1882 = vmul.f32 %v1184, %v1780
        %v1883 = vmul.f32 %v1186, %v1782
        %v1884 = vmul.f32 %v1188, %v1784
        %v1885 = vmul.f32 %v1192, %v1786
        %v1886 = vmul.f32 %v1194, %v1788
        %v1887 = vmul.f32 %v1196, %v1790
        %v1888 = vmul.f32 %v1198, %v1792
        %v1889 = vmul.f32 %v1202, %v1794
        %v1890 = vmul.f32 %v1204, %v1796
        %v1891 = vmul.f32 %v1206, %v1798
        %v1892 = vmul.f32 %v1208, %v1800
        %v1893 = vmul.f32 %v1212, %v1802
        %v1894 = vmul.f32 %v1214, %v1804
        %v1895 = vmul.f32 %v1216, %v1806
        %v1896 = vmul.f32 %v1218, %v1808
        %v1897 = vmul.f32 %v1222, %v1810
        %v1898 = vmul.f32 %v1224, %v1812
        %v1899 = vmul.f32 %v1226, %v1814
        %v1900 = vmul.f32 %v1228, %v1816
        %v1901 = vmul.f32 %v1232, %v1818
        %v1902 = vmul.f32 %v1234, %v1820
        %v1903 = vmul.f32 %v1236, %v1822
        %v1904 = vmul.f32 %v1238, %v1824
        %v1905 = vmul.f32 %v1242, %v1826
        %v1906 = vmul.f32 %v1244, %v1828
        %v1907 = vmul.f32 %v1246, %v1830
        %v1908 = vmul.f32 %v1248, %v1832
        %v1909 = vmul.f32 %v1252, %v1834
        %v1910 = vmul.f32 %v1254, %v1836
        %v1911 = vmul.f32 %v1256, %v1838
        %v1912 = vmul.f32 %v1258, %v1840
        %v1913 = vmul.f32 %v1262, %v1842
        %v1914 = vmul.f32 %v1264, %v1844
        %v1915 = vmul.f32 %v1266, %v1846
        %v1916 = vmul.f32 %v1268, %v1848
        %v1917 = vmul.f32 %v1272, %v1850
        %v1918 = vmul.f32 %v1274, %v1852
        %v1919 = vmul.f32 %v1276, %v1854
        %v1920 = vmul.f32 %v1278, %v1856
        %v1921 = vmul.f32 %v1857, %v1315
        %v1922 = vmul.f32 %v1858, %v1317
        %v1923 = vmul.f32 %v1859, %v1319
        %v1924 = vmul.f32 %v1860, %v1321
        %v1925 = vmul.f32 %v1861, %v1325
        %v1926 = vmul.f32 %v1862, %v1327
        %v1927 = vmul.f32 %v1863, %v1329
        %v1928 = vmul.f32 %v1864, %v1331
        %v1929 = vmul.f32 %v1865, %v1335
        %v1930 = vmul.f32 %v1866, %v1337
        %v1931 = vmul.f32 %v1867, %v1339
        %v1932 = vmul.f32 %v1868, %v1341
        %v1933 = vmul.f32 %v1869, %v1345
        %v1934 = vmul.f32 %v1870, %v1347
        %v1935 = vmul.f32 %v1871, %v1349
        %v1936 = vmul.f32 %v1872, %v1351
        %v1937 = vmul.f32 %v1873, %v1355
        %v1938 = vmul.f32 %v1874, %v1357
        %v1939 = vmul.f32 %v1875, %v1359
        %v1940 = vmul.f32 %v1876, %v1361
        %v1941 = vmul.f32 %v1877, %v1365
        %v1942 = vmul.f32 %v1878, %v1367
        %v1943 = vmul.f32 %v1879, %v1369
        %v1944 = vmul.f32 %v1880, %v1371
        %v1945 = vmul.f32 %v1881, %v1375
        %v1946 = vmul.f32 %v1882, %v1377
        %v1947 = vmul.f32 %v1883, %v1379
        %v1948 = vmul.f32 %v1884, %v1381
        %v1949 = vmul.f32 %v1885, %v1385
        %v1950 = vmul.f32 %v1886, %v1387
        %v1951 = vmul.f32 %v1887, %v1389
        %v1952 = vmul.f32 %v1888, %v1391
        %v1953 = vmul.f32 %v1889, %v1395
        %v1954 = vmul.f32 %v1890, %v1397
        %v1955 = vmul.f32 %v1891, %v1399
        %v1956 = vmul.f32 %v1892, %v1401
        %v1957 = vmul.f32 %v1893, %v1405
        %v1958 = vmul.f32 %v1894, %v1407
        %v1959 = vmul.f32 %v1895, %v1409
        %v1960 = vmul.f32 %v1896, %v1411
        %v1961 = vmul.f32 %v1897, %v1415
        %v1962 = vmul.f32 %v1898, %v1417
        %v1963 = vmul.f32 %v1899, %v1419
        %v1964 = vmul.f32 %v1900, %v1421
        %v1965 = vmul.f32 %v1901, %v1425
        %v1966 = vmul.f32 %v1902, %v1427
        %v1967 = vmul.f32 %v1903, %v1429
        %v1968 = vmul.f32 %v1904, %v1431
        %v1969 = vmul.f32 %v1905, %v1435
        %v1970 = vmul.f32 %v1906, %v1437
        %v1971 = vmul.f32 %v1907, %v1439
        %v1972 = vmul.f32 %v1908, %v1441
        %v1973 = vmul.f32 %v1909, %v1445
        %v1974 = vmul.f32 %v1910, %v1447
        %v1975 = vmul.f32 %v1911, %v1449
        %v1976 = vmul.f32 %v1912, %v1451
        %v1977 = vmul.f32 %v1913, %v1455
        %v1978 = vmul.f32 %v1914, %v1457
        %v1979 = vmul.f32 %v1915, %v1459
        %v1980 = vmul.f32 %v1916, %v1461
        %v1981 = vmul.f32 %v1917, %v1465
        %v1982 = vmul.f32 %v1918, %v1467
        %v1983 = vmul.f32 %v1919, %v1469
        %v1984 = vmul.f32 %v1920, %v1471
        %v1985 = vpack.c.bf16 %v1923, %v1921
        %v1986 = vpack.c.bf16 %v1924, %v1922
        %v1987 = vpack.c.bf16 %v1927, %v1925
        %v1988 = vpack.c.bf16 %v1928, %v1926
        %v1989 = vpack.c.bf16 %v1931, %v1929
        %v1990 = vpack.c.bf16 %v1932, %v1930
        %v1991 = vpack.c.bf16 %v1935, %v1933
        %v1992 = vpack.c.bf16 %v1936, %v1934
        %v1993 = vpack.c.bf16 %v1939, %v1937
        %v1994 = vpack.c.bf16 %v1940, %v1938
        %v1995 = vpack.c.bf16 %v1943, %v1941
        %v1996 = vpack.c.bf16 %v1944, %v1942
        %v1997 = vpack.c.bf16 %v1947, %v1945
        %v1998 = vpack.c.bf16 %v1948, %v1946
        %v1999 = vpack.c.bf16 %v1951, %v1949
        %v2000 = vpack.c.bf16 %v1952, %v1950
        %v2001 = vpack.c.bf16 %v1955, %v1953
        %v2002 = vpack.c.bf16 %v1956, %v1954
        %v2003 = vpack.c.bf16 %v1959, %v1957
        %v2004 = vpack.c.bf16 %v1960, %v1958
        %v2005 = vpack.c.bf16 %v1963, %v1961
        %v2006 = vpack.c.bf16 %v1964, %v1962
        %v2007 = vpack.c.bf16 %v1967, %v1965
        %v2008 = vpack.c.bf16 %v1968, %v1966
        %v2009 = vpack.c.bf16 %v1971, %v1969
        %v2010 = vpack.c.bf16 %v1972, %v1970
        %v2011 = vpack.c.bf16 %v1975, %v1973
        %v2012 = vpack.c.bf16 %v1976, %v1974
        %v2013 = vpack.c.bf16 %v1979, %v1977
        %v2014 = vpack.c.bf16 %v1980, %v1978
        %v2015 = vpack.c.bf16 %v1983, %v1981
        %v2016 = vpack.c.bf16 %v1984, %v1982
        %v2017 = vld [vmem:[%s376] sm:$0xff]
        %v2018 = vld [vmem:[%s376 + $0x8] sm:$0xff]
        %v2019 = vld [vmem:[%s376 + $0x10] sm:$0xff]
        %v2020 = vld [vmem:[%s376 + $0x18] sm:$0xff]
        %v2021 = vld [vmem:[%s376 + $0x20] sm:$0xff]
        %v2022 = vld [vmem:[%s376 + $0x28] sm:$0xff]
        %v2023 = vld [vmem:[%s376 + $0x30] sm:$0xff]
        %v2024 = vld [vmem:[%s376 + $0x38] sm:$0xff]
        %v2025 = vld [vmem:[%s376 + $0x40] sm:$0xff]
        %v2026 = vld [vmem:[%s376 + $0x48] sm:$0xff]
        %v2027 = vld [vmem:[%s376 + $0x50] sm:$0xff]
        %v2028 = vld [vmem:[%s376 + $0x58] sm:$0xff]
        %v2029 = vld [vmem:[%s376 + $0x60] sm:$0xff]
        %v2030 = vld [vmem:[%s376 + $0x68] sm:$0xff]
        %v2031 = vld [vmem:[%s376 + $0x70] sm:$0xff]
        %v2032 = vld [vmem:[%s376 + $0x78] sm:$0xff]
        %v2033 = vld [vmem:[%s376 + $0x80] sm:$0xff]
        %v2034 = vld [vmem:[%s376 + $0x88] sm:$0xff]
        %v2035 = vld [vmem:[%s376 + $0x90] sm:$0xff]
        %v2036 = vld [vmem:[%s376 + $0x98] sm:$0xff]
        %v2037 = vld [vmem:[%s376 + $0xa0] sm:$0xff]
        %v2038 = vld [vmem:[%s376 + $0xa8] sm:$0xff]
        %v2039 = vld [vmem:[%s376 + $0xb0] sm:$0xff]
        %v2040 = vld [vmem:[%s376 + $0xb8] sm:$0xff]
        %v2041 = vld [vmem:[%s376 + $0xc0] sm:$0xff]
        %v2042 = vld [vmem:[%s376 + $0xc8] sm:$0xff]
        %v2043 = vld [vmem:[%s376 + $0xd0] sm:$0xff]
        %v2044 = vld [vmem:[%s376 + $0xd8] sm:$0xff]
        %v2045 = vld [vmem:[%s376 + $0xe0] sm:$0xff]
        %v2046 = vld [vmem:[%s376 + $0xe8] sm:$0xff]
        %v2047 = vld [vmem:[%s376 + $0xf0] sm:$0xff]
        %v2048 = vld [vmem:[%s376 + $0xf8] sm:$0xff]
        %v2081 = vunpack.c.l.b16 %v2017
        %v2082 = vunpack.c.h.b16 %v2017
        %v2083 = vunpack.c.l.b16 %v2018
        %v2084 = vunpack.c.h.b16 %v2018
        %v2085 = vunpack.c.l.b16 %v2019
        %v2086 = vunpack.c.h.b16 %v2019
        %v2087 = vunpack.c.l.b16 %v2020
        %v2088 = vunpack.c.h.b16 %v2020
        %v2089 = vunpack.c.l.b16 %v2021
        %v2090 = vunpack.c.h.b16 %v2021
        %v2091 = vunpack.c.l.b16 %v2022
        %v2092 = vunpack.c.h.b16 %v2022
        %v2093 = vunpack.c.l.b16 %v2023
        %v2094 = vunpack.c.h.b16 %v2023
        %v2095 = vunpack.c.l.b16 %v2024
        %v2096 = vunpack.c.h.b16 %v2024
        %v2097 = vunpack.c.l.b16 %v2025
        %v2098 = vunpack.c.h.b16 %v2025
        %v2099 = vunpack.c.l.b16 %v2026
        %v2100 = vunpack.c.h.b16 %v2026
        %v2101 = vunpack.c.l.b16 %v2027
        %v2102 = vunpack.c.h.b16 %v2027
        %v2103 = vunpack.c.l.b16 %v2028
        %v2104 = vunpack.c.h.b16 %v2028
        %v2105 = vunpack.c.l.b16 %v2029
        %v2106 = vunpack.c.h.b16 %v2029
        %v2107 = vunpack.c.l.b16 %v2030
        %v2108 = vunpack.c.h.b16 %v2030
        %v2109 = vunpack.c.l.b16 %v2031
        %v2110 = vunpack.c.h.b16 %v2031
        %v2111 = vunpack.c.l.b16 %v2032
        %v2112 = vunpack.c.h.b16 %v2032
        %v2113 = vunpack.c.l.b16 %v2033
        %v2114 = vunpack.c.h.b16 %v2033
        %v2115 = vunpack.c.l.b16 %v2034
        %v2116 = vunpack.c.h.b16 %v2034
        %v2117 = vunpack.c.l.b16 %v2035
        %v2118 = vunpack.c.h.b16 %v2035
        %v2119 = vunpack.c.l.b16 %v2036
        %v2120 = vunpack.c.h.b16 %v2036
        %v2121 = vunpack.c.l.b16 %v2037
        %v2122 = vunpack.c.h.b16 %v2037
        %v2123 = vunpack.c.l.b16 %v2038
        %v2124 = vunpack.c.h.b16 %v2038
        %v2125 = vunpack.c.l.b16 %v2039
        %v2126 = vunpack.c.h.b16 %v2039
        %v2127 = vunpack.c.l.b16 %v2040
        %v2128 = vunpack.c.h.b16 %v2040
        %v2129 = vunpack.c.l.b16 %v2041
        %v2130 = vunpack.c.h.b16 %v2041
        %v2131 = vunpack.c.l.b16 %v2042
        %v2132 = vunpack.c.h.b16 %v2042
        %v2133 = vunpack.c.l.b16 %v2043
        %v2134 = vunpack.c.h.b16 %v2043
        %v2135 = vunpack.c.l.b16 %v2044
        %v2136 = vunpack.c.h.b16 %v2044
        %v2137 = vunpack.c.l.b16 %v2045
        %v2138 = vunpack.c.h.b16 %v2045
        %v2139 = vunpack.c.l.b16 %v2046
        %v2140 = vunpack.c.h.b16 %v2046
        %v2141 = vunpack.c.l.b16 %v2047
        %v2142 = vunpack.c.h.b16 %v2047
        %v2143 = vunpack.c.l.b16 %v2048
        %v2144 = vunpack.c.h.b16 %v2048
        %v2145 = vpack.c.b16 %v2083, %v2081
        %v2146 = vpack.c.b16 %v2084, %v2082
        %v2147 = vpack.c.b16 %v2087, %v2085
        %v2148 = vpack.c.b16 %v2088, %v2086
        %v2149 = vpack.c.b16 %v2091, %v2089
        %v2150 = vpack.c.b16 %v2092, %v2090
        %v2151 = vpack.c.b16 %v2095, %v2093
        %v2152 = vpack.c.b16 %v2096, %v2094
        %v2153 = vpack.c.b16 %v2099, %v2097
        %v2154 = vpack.c.b16 %v2100, %v2098
        %v2155 = vpack.c.b16 %v2103, %v2101
        %v2156 = vpack.c.b16 %v2104, %v2102
        %v2157 = vpack.c.b16 %v2107, %v2105
        %v2158 = vpack.c.b16 %v2108, %v2106
        %v2159 = vpack.c.b16 %v2111, %v2109
        %v2160 = vpack.c.b16 %v2112, %v2110
        %v2161 = vpack.c.b16 %v2115, %v2113
        %v2162 = vpack.c.b16 %v2116, %v2114
        %v2163 = vpack.c.b16 %v2119, %v2117
        %v2164 = vpack.c.b16 %v2120, %v2118
        %v2165 = vpack.c.b16 %v2123, %v2121
        %v2166 = vpack.c.b16 %v2124, %v2122
        %v2167 = vpack.c.b16 %v2127, %v2125
        %v2168 = vpack.c.b16 %v2128, %v2126
        %v2169 = vpack.c.b16 %v2131, %v2129
        %v2170 = vpack.c.b16 %v2132, %v2130
        %v2171 = vpack.c.b16 %v2135, %v2133
        %v2172 = vpack.c.b16 %v2136, %v2134
        %v2173 = vpack.c.b16 %v2139, %v2137
        %v2174 = vpack.c.b16 %v2140, %v2138
        %v2175 = vpack.c.b16 %v2143, %v2141
        %v2176 = vpack.c.b16 %v2144, %v2142
        %2209 = vmatprep.subr.bf16.mxu0 %v2146
        %2210 = vmatpush1.bf16.msra.mxu0 %v2145
        %2211 = vmatprep.subr.bf16.mxu0 %v2148
        %2212 = vmatpush1.bf16.msra.mxu0 %v2147
        %2213 = vmatprep.subr.bf16.mxu0 %v2150
        %2214 = vmatpush1.bf16.msra.mxu0 %v2149
        %2215 = vmatprep.subr.bf16.mxu0 %v2152
        %2216 = vmatpush1.bf16.msra.mxu0 %v2151
        %2217 = vmatprep.subr.bf16.mxu0 %v2154
        %2218 = vmatpush1.bf16.msra.mxu0 %v2153
        %2219 = vmatprep.subr.bf16.mxu0 %v2156
        %2220 = vmatpush1.bf16.msra.mxu0 %v2155
        %2221 = vmatprep.subr.bf16.mxu0 %v2158
        %2222 = vmatpush1.bf16.msra.mxu0 %v2157
        %2223 = vmatprep.subr.bf16.mxu0 %v2160
        %2224 = vmatpush1.bf16.msra.mxu0 %v2159
        %2225 = vmatprep.subr.bf16.mxu0 %v2162
        %2226 = vmatpush1.bf16.msra.mxu0 %v2161
        %2227 = vmatprep.subr.bf16.mxu0 %v2164
        %2228 = vmatpush1.bf16.msra.mxu0 %v2163
        %2229 = vmatprep.subr.bf16.mxu0 %v2166
        %2230 = vmatpush1.bf16.msra.mxu0 %v2165
        %2231 = vmatprep.subr.bf16.mxu0 %v2168
        %2232 = vmatpush1.bf16.msra.mxu0 %v2167
        %2233 = vmatprep.subr.bf16.mxu0 %v2170
        %2234 = vmatpush1.bf16.msra.mxu0 %v2169
        %2235 = vmatprep.subr.bf16.mxu0 %v2172
        %2236 = vmatpush1.bf16.msra.mxu0 %v2171
        %2237 = vmatprep.subr.bf16.mxu0 %v2174
        %2238 = vmatpush1.bf16.msra.mxu0 %v2173
        %2239 = vmatprep.subr.bf16.mxu0 %v2176
        %2240 = vmatpush1.bf16.msra.mxu0 %v2175
        %2241 = vmatprep.mubr.bf16.mxu0 %v1986
        %2242 = vmatmul.mubr.bf16.gmra.mrb[0].mxu0 %v1985
        %v2243 = vpop.f32.mrb[0].mxu0
        %v2244 = vadd.f32 0.0, %v2243
        %v2245 = vpop.f32.mrb[0].mxu0
        %v2246 = vadd.f32 0.0, %v2245
        %v2247 = vpop.f32.mrb[0].mxu0
        %v2248 = vadd.f32 0.0, %v2247
        %v2249 = vpop.f32.mrb[0].mxu0
        %v2250 = vadd.f32 0.0, %v2249
        %2251 = vmatprep.mubr.bf16.mxu0 %v1988
        %2252 = vmatmul.mubr.bf16.gmra.mrb[0].mxu0 %v1987
        %v2253 = vpop.f32.mrb[0].mxu0
        %v2254 = vadd.f32 0.0, %v2253
        %v2255 = vpop.f32.mrb[0].mxu0
        %v2256 = vadd.f32 0.0, %v2255
        %v2257 = vpop.f32.mrb[0].mxu0
        %v2258 = vadd.f32 0.0, %v2257
        %v2259 = vpop.f32.mrb[0].mxu0
        %v2260 = vadd.f32 0.0, %v2259
        %2261 = vmatprep.mubr.bf16.mxu0 %v1990
        %2262 = vmatmul.mubr.bf16.gmra.mrb[0].mxu0 %v1989
        %v2263 = vpop.f32.mrb[0].mxu0
        %v2264 = vadd.f32 0.0, %v2263
        %v2265 = vpop.f32.mrb[0].mxu0
        %v2266 = vadd.f32 0.0, %v2265
        %v2267 = vpop.f32.mrb[0].mxu0
        %v2268 = vadd.f32 0.0, %v2267
        %v2269 = vpop.f32.mrb[0].mxu0
        %v2270 = vadd.f32 0.0, %v2269
        %2271 = vmatprep.mubr.bf16.mxu0 %v1992
        %2272 = vmatmul.mubr.bf16.gmra.mrb[0].mxu0 %v1991
        %v2273 = vpop.f32.mrb[0].mxu0
        %v2274 = vadd.f32 0.0, %v2273
        %v2275 = vpop.f32.mrb[0].mxu0
        %v2276 = vadd.f32 0.0, %v2275
        %v2277 = vpop.f32.mrb[0].mxu0
        %v2278 = vadd.f32 0.0, %v2277
        %v2279 = vpop.f32.mrb[0].mxu0
        %v2280 = vadd.f32 0.0, %v2279
        %2281 = vmatprep.mubr.bf16.mxu0 %v1994
        %2282 = vmatmul.mubr.bf16.gmra.mrb[0].mxu0 %v1993
        %v2283 = vpop.f32.mrb[0].mxu0
        %v2284 = vadd.f32 0.0, %v2283
        %v2285 = vpop.f32.mrb[0].mxu0
        %v2286 = vadd.f32 0.0, %v2285
        %v2287 = vpop.f32.mrb[0].mxu0
        %v2288 = vadd.f32 0.0, %v2287
        %v2289 = vpop.f32.mrb[0].mxu0
        %v2290 = vadd.f32 0.0, %v2289
        %2291 = vmatprep.mubr.bf16.mxu0 %v1996
        %2292 = vmatmul.mubr.bf16.gmra.mrb[0].mxu0 %v1995
        %v2293 = vpop.f32.mrb[0].mxu0
        %v2294 = vadd.f32 0.0, %v2293
        %v2295 = vpop.f32.mrb[0].mxu0
        %v2296 = vadd.f32 0.0, %v2295
        %v2297 = vpop.f32.mrb[0].mxu0
        %v2298 = vadd.f32 0.0, %v2297
        %v2299 = vpop.f32.mrb[0].mxu0
        %v2300 = vadd.f32 0.0, %v2299
        %2301 = vmatprep.mubr.bf16.mxu0 %v1998
        %2302 = vmatmul.mubr.bf16.gmra.mrb[0].mxu0 %v1997
        %v2303 = vpop.f32.mrb[0].mxu0
        %v2304 = vadd.f32 0.0, %v2303
        %v2305 = vpop.f32.mrb[0].mxu0
        %v2306 = vadd.f32 0.0, %v2305
        %v2307 = vpop.f32.mrb[0].mxu0
        %v2308 = vadd.f32 0.0, %v2307
        %v2309 = vpop.f32.mrb[0].mxu0
        %v2310 = vadd.f32 0.0, %v2309
        %2311 = vmatprep.mubr.bf16.mxu0 %v2000
        %2312 = vmatmul.mubr.bf16.gmra.mrb[0].mxu0 %v1999
        %v2313 = vpop.f32.mrb[0].mxu0
        %v2314 = vadd.f32 0.0, %v2313
        %v2315 = vpop.f32.mrb[0].mxu0
        %v2316 = vadd.f32 0.0, %v2315
        %v2317 = vpop.f32.mrb[0].mxu0
        %v2318 = vadd.f32 0.0, %v2317
        %v2319 = vpop.f32.mrb[0].mxu0
        %v2320 = vadd.f32 0.0, %v2319
        %2321 = vmatprep.mubr.bf16.mxu0 %v2002
        %2322 = vmatmul.mubr.bf16.gmra.mrb[0].mxu0 %v2001
        %v2323 = vpop.f32.mrb[0].mxu0
        %v2324 = vadd.f32 0.0, %v2323
        %v2325 = vpop.f32.mrb[0].mxu0
        %v2326 = vadd.f32 0.0, %v2325
        %v2327 = vpop.f32.mrb[0].mxu0
        %v2328 = vadd.f32 0.0, %v2327
        %v2329 = vpop.f32.mrb[0].mxu0
        %v2330 = vadd.f32 0.0, %v2329
        %2331 = vmatprep.mubr.bf16.mxu0 %v2004
        %2332 = vmatmul.mubr.bf16.gmra.mrb[0].mxu0 %v2003
        %v2333 = vpop.f32.mrb[0].mxu0
        %v2334 = vadd.f32 0.0, %v2333
        %v2335 = vpop.f32.mrb[0].mxu0
        %v2336 = vadd.f32 0.0, %v2335
        %v2337 = vpop.f32.mrb[0].mxu0
        %v2338 = vadd.f32 0.0, %v2337
        %v2339 = vpop.f32.mrb[0].mxu0
        %v2340 = vadd.f32 0.0, %v2339
        %2341 = vmatprep.mubr.bf16.mxu0 %v2006
        %2342 = vmatmul.mubr.bf16.gmra.mrb[0].mxu0 %v2005
        %v2343 = vpop.f32.mrb[0].mxu0
        %v2344 = vadd.f32 0.0, %v2343
        %v2345 = vpop.f32.mrb[0].mxu0
        %v2346 = vadd.f32 0.0, %v2345
        %v2347 = vpop.f32.mrb[0].mxu0
        %v2348 = vadd.f32 0.0, %v2347
        %v2349 = vpop.f32.mrb[0].mxu0
        %v2350 = vadd.f32 0.0, %v2349
        %2351 = vmatprep.mubr.bf16.mxu0 %v2008
        %2352 = vmatmul.mubr.bf16.gmra.mrb[0].mxu0 %v2007
        %v2353 = vpop.f32.mrb[0].mxu0
        %v2354 = vadd.f32 0.0, %v2353
        %v2355 = vpop.f32.mrb[0].mxu0
        %v2356 = vadd.f32 0.0, %v2355
        %v2357 = vpop.f32.mrb[0].mxu0
        %v2358 = vadd.f32 0.0, %v2357
        %v2359 = vpop.f32.mrb[0].mxu0
        %v2360 = vadd.f32 0.0, %v2359
        %2361 = vmatprep.mubr.bf16.mxu0 %v2010
        %2362 = vmatmul.mubr.bf16.gmra.mrb[0].mxu0 %v2009
        %v2363 = vpop.f32.mrb[0].mxu0
        %v2364 = vadd.f32 0.0, %v2363
        %v2365 = vpop.f32.mrb[0].mxu0
        %v2366 = vadd.f32 0.0, %v2365
        %v2367 = vpop.f32.mrb[0].mxu0
        %v2368 = vadd.f32 0.0, %v2367
        %v2369 = vpop.f32.mrb[0].mxu0
        %v2370 = vadd.f32 0.0, %v2369
        %2371 = vmatprep.mubr.bf16.mxu0 %v2012
        %2372 = vmatmul.mubr.bf16.gmra.mrb[0].mxu0 %v2011
        %v2373 = vpop.f32.mrb[0].mxu0
        %v2374 = vadd.f32 0.0, %v2373
        %v2375 = vpop.f32.mrb[0].mxu0
        %v2376 = vadd.f32 0.0, %v2375
        %v2377 = vpop.f32.mrb[0].mxu0
        %v2378 = vadd.f32 0.0, %v2377
        %v2379 = vpop.f32.mrb[0].mxu0
        %v2380 = vadd.f32 0.0, %v2379
        %2381 = vmatprep.mubr.bf16.mxu0 %v2014
        %2382 = vmatmul.mubr.bf16.gmra.mrb[0].mxu0 %v2013
        %v2383 = vpop.f32.mrb[0].mxu0
        %v2384 = vadd.f32 0.0, %v2383
        %v2385 = vpop.f32.mrb[0].mxu0
        %v2386 = vadd.f32 0.0, %v2385
        %v2387 = vpop.f32.mrb[0].mxu0
        %v2388 = vadd.f32 0.0, %v2387
        %v2389 = vpop.f32.mrb[0].mxu0
        %v2390 = vadd.f32 0.0, %v2389
        %2391 = vmatprep.mubr.bf16.mxu0 %v2016
        %2392 = vmatmul.mubr.bf16.gmra.mrb[0].mxu0 %v2015
        %v2393 = vpop.f32.mrb[0].mxu0
        %v2394 = vadd.f32 0.0, %v2393
        %v2395 = vpop.f32.mrb[0].mxu0
        %v2396 = vadd.f32 0.0, %v2395
        %v2397 = vpop.f32.mrb[0].mxu0
        %v2398 = vadd.f32 0.0, %v2397
        %v2399 = vpop.f32.mrb[0].mxu0
        %v2400 = vadd.f32 0.0, %v2399
        %2401 = vdwg.mxu0
        %v2402 = vadd.f32 %v447, %v2244
        %v2403 = vadd.f32 %v448, %v2246
        %v2404 = vadd.f32 %v449, %v2248
        %v2405 = vadd.f32 %v450, %v2250
        %v2406 = vadd.f32 %v451, %v2254
        %v2407 = vadd.f32 %v452, %v2256
        %v2408 = vadd.f32 %v453, %v2258
        %v2409 = vadd.f32 %v454, %v2260
        %v2410 = vadd.f32 %v455, %v2264
        %v2411 = vadd.f32 %v456, %v2266
        %v2412 = vadd.f32 %v457, %v2268
        %v2413 = vadd.f32 %v458, %v2270
        %v2414 = vadd.f32 %v459, %v2274
        %v2415 = vadd.f32 %v460, %v2276
        %v2416 = vadd.f32 %v461, %v2278
        %v2417 = vadd.f32 %v462, %v2280
        %v2418 = vadd.f32 %v463, %v2284
        %v2419 = vadd.f32 %v464, %v2286
        %v2420 = vadd.f32 %v465, %v2288
        %v2421 = vadd.f32 %v466, %v2290
        %v2422 = vadd.f32 %v467, %v2294
        %v2423 = vadd.f32 %v468, %v2296
        %v2424 = vadd.f32 %v469, %v2298
        %v2425 = vadd.f32 %v470, %v2300
        %v2426 = vadd.f32 %v471, %v2304
        %v2427 = vadd.f32 %v472, %v2306
        %v2428 = vadd.f32 %v473, %v2308
        %v2429 = vadd.f32 %v474, %v2310
        %v2430 = vadd.f32 %v475, %v2314
        %v2431 = vadd.f32 %v476, %v2316
        %v2432 = vadd.f32 %v477, %v2318
        %v2433 = vadd.f32 %v478, %v2320
        %v2434 = vadd.f32 %v479, %v2324
        %v2435 = vadd.f32 %v480, %v2326
        %v2436 = vadd.f32 %v481, %v2328
        %v2437 = vadd.f32 %v482, %v2330
        %v2438 = vadd.f32 %v483, %v2334
        %v2439 = vadd.f32 %v484, %v2336
        %v2440 = vadd.f32 %v485, %v2338
        %v2441 = vadd.f32 %v486, %v2340
        %v2442 = vadd.f32 %v487, %v2344
        %v2443 = vadd.f32 %v488, %v2346
        %v2444 = vadd.f32 %v489, %v2348
        %v2445 = vadd.f32 %v490, %v2350
        %v2446 = vadd.f32 %v491, %v2354
        %v2447 = vadd.f32 %v492, %v2356
        %v2448 = vadd.f32 %v493, %v2358
        %v2449 = vadd.f32 %v494, %v2360
        %v2450 = vadd.f32 %v495, %v2364
        %v2451 = vadd.f32 %v496, %v2366
        %v2452 = vadd.f32 %v497, %v2368
        %v2453 = vadd.f32 %v498, %v2370
        %v2454 = vadd.f32 %v499, %v2374
        %v2455 = vadd.f32 %v500, %v2376
        %v2456 = vadd.f32 %v501, %v2378
        %v2457 = vadd.f32 %v502, %v2380
        %v2458 = vadd.f32 %v503, %v2384
        %v2459 = vadd.f32 %v504, %v2386
        %v2460 = vadd.f32 %v505, %v2388
        %v2461 = vadd.f32 %v506, %v2390
        %v2462 = vadd.f32 %v507, %v2394
        %v2463 = vadd.f32 %v508, %v2396
        %v2464 = vadd.f32 %v509, %v2398
        %v2465 = vadd.f32 %v510, %v2400
        %2466 = vst [vmem:[%s362] sm:$0xff] %v2402
        %2467 = vst [vmem:[%s362 + $0x8] sm:$0xff] %v2403
        %2468 = vst [vmem:[%s362 + $0x10] sm:$0xff] %v2404
        %2469 = vst [vmem:[%s362 + $0x18] sm:$0xff] %v2405
        %2470 = vst [vmem:[%s362 + $0x20] sm:$0xff] %v2406
        %2471 = vst [vmem:[%s362 + $0x28] sm:$0xff] %v2407
        %2472 = vst [vmem:[%s362 + $0x30] sm:$0xff] %v2408
        %2473 = vst [vmem:[%s362 + $0x38] sm:$0xff] %v2409
        %2474 = vst [vmem:[%s362 + $0x40] sm:$0xff] %v2410
        %2475 = vst [vmem:[%s362 + $0x48] sm:$0xff] %v2411
        %2476 = vst [vmem:[%s362 + $0x50] sm:$0xff] %v2412
        %2477 = vst [vmem:[%s362 + $0x58] sm:$0xff] %v2413
        %2478 = vst [vmem:[%s362 + $0x60] sm:$0xff] %v2414
        %2479 = vst [vmem:[%s362 + $0x68] sm:$0xff] %v2415
        %2480 = vst [vmem:[%s362 + $0x70] sm:$0xff] %v2416
        %2481 = vst [vmem:[%s362 + $0x78] sm:$0xff] %v2417
        %2482 = vst [vmem:[%s362 + $0x80] sm:$0xff] %v2418
        %2483 = vst [vmem:[%s362 + $0x88] sm:$0xff] %v2419
        %2484 = vst [vmem:[%s362 + $0x90] sm:$0xff] %v2420
        %2485 = vst [vmem:[%s362 + $0x98] sm:$0xff] %v2421
        %2486 = vst [vmem:[%s362 + $0xa0] sm:$0xff] %v2422
        %2487 = vst [vmem:[%s362 + $0xa8] sm:$0xff] %v2423
        %2488 = vst [vmem:[%s362 + $0xb0] sm:$0xff] %v2424
        %2489 = vst [vmem:[%s362 + $0xb8] sm:$0xff] %v2425
        %2490 = vst [vmem:[%s362 + $0xc0] sm:$0xff] %v2426
        %2491 = vst [vmem:[%s362 + $0xc8] sm:$0xff] %v2427
        %2492 = vst [vmem:[%s362 + $0xd0] sm:$0xff] %v2428
        %2493 = vst [vmem:[%s362 + $0xd8] sm:$0xff] %v2429
        %2494 = vst [vmem:[%s362 + $0xe0] sm:$0xff] %v2430
        %2495 = vst [vmem:[%s362 + $0xe8] sm:$0xff] %v2431
        %2496 = vst [vmem:[%s362 + $0xf0] sm:$0xff] %v2432
        %2497 = vst [vmem:[%s362 + $0xf8] sm:$0xff] %v2433
        %2498 = vst [vmem:[%s362 + $0x100] sm:$0xff] %v2434
        %2499 = vst [vmem:[%s362 + $0x108] sm:$0xff] %v2435
        %2500 = vst [vmem:[%s362 + $0x110] sm:$0xff] %v2436
        %2501 = vst [vmem:[%s362 + $0x118] sm:$0xff] %v2437
        %2502 = vst [vmem:[%s362 + $0x120] sm:$0xff] %v2438
        %2503 = vst [vmem:[%s362 + $0x128] sm:$0xff] %v2439
        %2504 = vst [vmem:[%s362 + $0x130] sm:$0xff] %v2440
        %2505 = vst [vmem:[%s362 + $0x138] sm:$0xff] %v2441
        %2506 = vst [vmem:[%s362 + $0x140] sm:$0xff] %v2442
        %2507 = vst [vmem:[%s362 + $0x148] sm:$0xff] %v2443
        %2508 = vst [vmem:[%s362 + $0x150] sm:$0xff] %v2444
        %2509 = vst [vmem:[%s362 + $0x158] sm:$0xff] %v2445
        %2510 = vst [vmem:[%s362 + $0x160] sm:$0xff] %v2446
        %2511 = vst [vmem:[%s362 + $0x168] sm:$0xff] %v2447
        %2512 = vst [vmem:[%s362 + $0x170] sm:$0xff] %v2448
        %2513 = vst [vmem:[%s362 + $0x178] sm:$0xff] %v2449
        %2514 = vst [vmem:[%s362 + $0x180] sm:$0xff] %v2450
        %2515 = vst [vmem:[%s362 + $0x188] sm:$0xff] %v2451
        %2516 = vst [vmem:[%s362 + $0x190] sm:$0xff] %v2452
        %2517 = vst [vmem:[%s362 + $0x198] sm:$0xff] %v2453
        %2518 = vst [vmem:[%s362 + $0x1a0] sm:$0xff] %v2454
        %2519 = vst [vmem:[%s362 + $0x1a8] sm:$0xff] %v2455
        %2520 = vst [vmem:[%s362 + $0x1b0] sm:$0xff] %v2456
        %2521 = vst [vmem:[%s362 + $0x1b8] sm:$0xff] %v2457
        %2522 = vst [vmem:[%s362 + $0x1c0] sm:$0xff] %v2458
        %2523 = vst [vmem:[%s362 + $0x1c8] sm:$0xff] %v2459
        %2524 = vst [vmem:[%s362 + $0x1d0] sm:$0xff] %v2460
        %2525 = vst [vmem:[%s362 + $0x1d8] sm:$0xff] %v2461
        %2526 = vst [vmem:[%s362 + $0x1e0] sm:$0xff] %v2462
        %2527 = vst [vmem:[%s362 + $0x1e8] sm:$0xff] %v2463
        %2528 = vst [vmem:[%s362 + $0x1f0] sm:$0xff] %v2464
        %2529 = vst [vmem:[%s362 + $0x1f8] sm:$0xff] %v2465
        %s2530 = sand.u32 %s115, 1
        %s2531 = scalar_lea.sflag [#allocation4], %s2530
        %s2532 = sand.u32 %s115, 1
        %s2533 = smul.addr %s2532, 512
        %s2534 = scalar_lea.vmem [#allocation3], %s2533
        // Predicated region
        $region60: #{feedforward_pallas.1} parent=50 // pred_check
          %p2535 = pneg %p125
        $region61: #{feedforward_pallas.1} parent=50 // pred_check_branch
          %2537 = sbr.rel (%p2535) target = $region63
        $region62: #{feedforward_pallas.1} parent=50 // pred_region
          %s2538 = smul.u32 32, %s21
          %s2540 = ssub.s32 8192, 8192
          %2541 = vsyncadd %s2531, %s2540
          %s2542 = smul.addr %s2538, 2
          %s2543 = smul.addr %s2542, 128
          %s2544 = scalar_lea.hbm %s3, %s2543
          %s2545 = sshll.u32 %s2534, 4
          %s2546 = int_to_ptr.vmem [resolvable:$true] %s2545
          %2551 = dma.vmem_to_hbm [thread:$0]  %s2546, 8192, %s2544, %s2531, 256, 256, 16
        $region63: #{feedforward_pallas.1} parent=50 // pred_fallthru
          _
      $region51: #{feedforward_pallas.1} parent=5 // pred_fallthru
        _
      %p2552 = scmp.le.s32.totalorder 2, %s12
      // Predicated region
      $region64: #{feedforward_pallas.1} parent=5 // pred_check
        %p2553 = pneg %p2552
      $region65: #{feedforward_pallas.1} parent=5 // pred_check_branch
        %2555 = sbr.rel (%p2553) target = $region67
      $region66: #{feedforward_pallas.1} parent=5 // pred_region
        %s2556 = ssub.s32 %s12, 2
        // Predicated region
        $region68: #{feedforward_pallas.1} parent=66 // pred_check
          %p2557 = pneg %p131
        $region69: #{feedforward_pallas.1} parent=66 // pred_check_branch
          %2559 = sbr.rel (%p2557) target = $region71
        $region70: #{feedforward_pallas.1} parent=66 // pred_region
          %s2560 = sand.u32 %s116, 1
          %s2561 = scalar_lea.sflag [#allocation4], %s2560
          %s2562 = sand.u32 %s116, 1
          %s2563 = smul.addr %s2562, 512
          %s2564 = scalar_lea.vmem [#allocation3], %s2563
          %2565 = dma.done %s2561, 8192
        $region71: #{feedforward_pallas.1} parent=66 // pred_fallthru
          _
      $region67: #{feedforward_pallas.1} parent=5 // pred_fallthru
        _
    $region6: #{feedforward_pallas.1} parent=1 // loop_footer
      %s16 = sadd.s32 1, %s12
    $region7: #{feedforward_pallas.1} parent=1 // loop_footer_branch
      %11 = sbr.rel target = $region3
    $region8: #{feedforward_pallas.1} parent=1 // loop_exit
      _
    %2566 = vsyncpa [#allocation4], 1
    %s2567 = scalar_lea.sflag [#allocation4], 1
    %2568 = vsyncpa %s2567, 1

</llo_original>
